<compile_context>
chip_gen: v7x
topology: tpu7x:2x2x1
jax: 0.10.0
libtpu: 0.0.40
codegen_flags: <defaults>
</compile_context>

<pallas_src>
import functools

import jax
import jax.numpy as jnp
import numpy as np
from jax import lax
from jax.experimental import pallas as pl
from jax.experimental.pallas import tpu as pltpu


def _mha_kernel(xq_ref, xkv_ref, wq_ref, bq_ref, wk_ref, wv_ref, bv_ref,
                wot_ref, bo_ref, out_ref, *rest,
                head_dim, heads_per_group, block_q, causal, return_qk,
                compute_dtype, approx_recip):
    if return_qk:
        qk_ref, acc_ref = rest
    else:
        (acc_ref,) = rest

    qi = pl.program_id(1)            # query tile index
    g = pl.program_id(2)             # head-group index (innermost, reduction axis for `out`)
    n_groups = pl.num_programs(2)

    cd = compute_dtype
    dn_ff = (((1,), (1,)), ((), ()))     # contract the shared feature (last) dim: A @ B^T, no transpose
    dn_mm = (((1,), (0,)), ((), ()))     # standard matmul: A @ B

    x_q = xq_ref[0]                       # (tq, C)  query rows of this tile
    x_kv = xkv_ref[0]                     # (T,  C)  full sequence for keys / values
    T = x_kv.shape[0]

    # Grouped projections: one wide MXU matmul per projection (N = heads_per_group * hd).
    # scale**2 == hd**-0.5 is already folded into Wq / bq on the host.
    q = lax.dot_general(x_q, wq_ref[...], dn_ff,
                        preferred_element_type=jnp.float32) + bq_ref[0]    # (tq, gw) f32
    k = lax.dot_general(x_kv, wk_ref[...], dn_ff,
                        preferred_element_type=jnp.float32)                # (T,  gw) f32
    v = lax.dot_general(x_kv, wv_ref[...], dn_ff,
                        preferred_element_type=jnp.float32) + bv_ref[0]    # (T,  gw) f32
    qc = q.astype(cd)
    kc = k.astype(cd)
    vc = v.astype(cd)

    # Causal bias generated in-kernel (no (T, T) mask input), hoisted out of the head loop.
    if causal:
        rows = lax.broadcasted_iota(jnp.int32, (block_q, T), 0) + qi * block_q
        cols = lax.broadcasted_iota(jnp.int32, (block_q, T), 1)
        bias = jnp.where(cols > rows, -jnp.inf, 0.0).astype(jnp.float32)

    # Score / softmax / w@v are inherently per-head; short unrolled loop over the group.
    wv_parts = []
    for i in range(heads_per_group):
        sl = slice(i * head_dim, (i + 1) * head_dim)
        s = lax.dot_general(qc[:, sl], kc[:, sl], dn_ff,
                            preferred_element_type=jnp.float32)            # (tq, T) == q_h @ k_h^T
        if causal:
            s = s + bias
        if return_qk:
            qk_ref[0, i] = s                                               # f32, matches qk.float()

        # Softmax: per-row reciprocal (EUP on the low-precision path) instead of a (tq,T) divide.
        # NOTE: a fully masked row would give NaN; the causal mask always keeps the diagonal.
        m = jnp.max(s, axis=-1, keepdims=True)
        e = jnp.exp(s - m)
        denom = jnp.sum(e, axis=-1, keepdims=True)
        inv = pl.reciprocal(denom, approx=True) if approx_recip else 1.0 / denom
        w = (e * inv).astype(cd)

        wv_parts.append(jnp.dot(w, vc[:, sl], preferred_element_type=jnp.float32))  # (tq, hd)

    wv_grp = wv_parts[0] if heads_per_group == 1 else jnp.concatenate(wv_parts, axis=-1)

    # Group contribution to the output projection: (tq, gw) @ (gw, C), K = gw (not hd).
    contrib = lax.dot_general(wv_grp.astype(cd), wot_ref[...], dn_mm,
                              preferred_element_type=jnp.float32)          # (tq, C) f32

    @pl.when(g == 0)
    def _():
        acc_ref[...] = contrib            # direct write: no zero-fill + add on the first group

    @pl.when(g > 0)
    def _():
        acc_ref[...] += contrib

    @pl.when(g == n_groups - 1)
    def _():
        out_ref[0] = (acc_ref[...] + bo_ref[...]).astype(out_ref.dtype)


def _vmem_capacity_bytes():
    """Physical VMEM for this TPU generation (conservative 64 MiB fallback)."""
    try:
        cap = getattr(pltpu.get_tpu_info(), "vmem_capacity_bytes", None)
        if cap:
            return int(cap)
    except Exception:
        pass
    return 64 * 1024 * 1024


def _vmem_limit_bytes(T, tq, C, gw, itemsize, hg, return_qk):
    """Per-step VMEM budget (with headroom), clamped to 80% of this generation's VMEM."""
    dbl = 2                                            # pipelined operands are double-buffered
    per_step = 0
    per_step += dbl * tq * C * itemsize                # x query tile
    per_step += dbl * T * C * itemsize                 # x full-sequence block (for K / V)
    per_step += dbl * 4 * gw * C * itemsize            # Wq / Wk / Wv / Wo^T group slices
    per_step += dbl * (2 * gw + C) * 4                 # biases (f32)
    per_step += dbl * tq * C * itemsize                # out block
    if return_qk:
        per_step += dbl * hg * tq * T * 4              # qk output block (f32)
    per_step += tq * C * 4                             # f32 output accumulator scratch
    per_step += (tq + 2 * T) * gw * (4 + itemsize)     # q/k/v f32 + compute-dtype copies
    per_step += 3 * tq * T * 4                         # score / exp / causal-bias tiles
    per_step += 2 * tq * C * 4                         # contrib + misc temporaries
    budget = 2 * per_step                              # 2x headroom for the compiler
    cap = int(0.8 * _vmem_capacity_bytes())            # ~100 MiB on v5e/v6e, ~50 MiB on v7x
    return int(min(max(budget, 32 * 1024 * 1024), cap))


def multi_head_attention(x, params, n_head, *, causal=False, return_qk=True,
                         compute_dtype=jnp.bfloat16, block_q=256, heads_per_group=None):
    """Whisper MultiHeadAttention self-attention forward.

    x:       (B, T, C)
    params:  (wq, bq, wk, wv, bv, wo, bo), PyTorch Linear layout (out_features, in_features).
    causal:  True -> Whisper decoder causal mask (generated in-kernel); False -> mask=None path.
    return_qk: also return the pre-softmax scores (B, n_head, T, T) float32 (qk.float()).
    compute_dtype: MXU operand dtype (default bfloat16, f32 accumulation). `out` is returned
                   in x.dtype regardless (intentional: matches the f32 PyTorch reference).
    block_q: query-tile length (rounded to a multiple of 8, capped at T). Use <=256 on v5e.
    heads_per_group: heads per grid step. Default fills a 256-wide MXU column (v6e/v7x);
                     pass 128 // head_dim on v5e.
    """
    B, T, C = x.shape
    assert C % n_head == 0
    hd = C // n_head
    compute_dtype = jnp.dtype(compute_dtype)
    out_dtype = x.dtype

    # Softmax scaling: reference applies scale=hd**-0.25 to q and to k; fold scale**2 into Wq/bq.
    scale2 = float(hd ** -0.5)

    # Head grouping: fill the MXU output width; keep gw a multiple of 8 and dividing n_head.
    if heads_per_group is None:
        heads_per_group = max(1, min(n_head, 256 // hd))
    while heads_per_group > 1 and (n_head % heads_per_group or (heads_per_group * hd) % 8):
        heads_per_group -= 1
    n_groups = n_head // heads_per_group
    gw = heads_per_group * hd

    # Query tiling: bounds the (tq, T) score tile and the (tq, C) out / accumulator blocks.
    tq = min(block_q, T)
    if tq < T:
        tq = max(8, (tq // 8) * 8)
    n_q = pl.cdiv(T, tq)

    wq, bq, wk, wv, bv, wo, bo = params
    cast = lambda a: a.astype(compute_dtype)

    x_c = cast(x)
    wq_c = cast(wq * scale2)                              # scale folded into the weights
    wk_c = cast(wk)
    wv_c = cast(wv)
    wot_c = cast(wo).T                                    # (C_in, C_out): group rows = head dims
    bq_g = (bq * scale2).astype(jnp.float32).reshape(n_groups, 1, gw)
    bv_g = bv.astype(jnp.float32).reshape(n_groups, 1, gw)
    bo_2 = bo.astype(jnp.float32).reshape(1, C)

    kernel = functools.partial(
        _mha_kernel, head_dim=hd, heads_per_group=heads_per_group, block_q=tq,
        causal=causal, return_qk=return_qk, compute_dtype=compute_dtype,
        approx_recip=(compute_dtype != jnp.dtype(jnp.float32)))

    out_spec = pl.BlockSpec((1, tq, C), lambda b, qi, g: (b, qi, 0))
    if return_qk:
        out_shape = (jax.ShapeDtypeStruct((B, T, C), out_dtype),
                     jax.ShapeDtypeStruct((B, n_head, T, T), jnp.float32))
        out_specs = (out_spec,
                     pl.BlockSpec((1, heads_per_group, tq, T),
                                  lambda b, qi, g: (b, g, qi, 0)))
    else:
        out_shape = jax.ShapeDtypeStruct((B, T, C), out_dtype)
        out_specs = out_spec

    return pl.pallas_call(
        kernel,
        out_shape=out_shape,
        grid_spec=pltpu.PrefetchScalarGridSpec(
            num_scalar_prefetch=0,
            grid=(B, n_q, n_groups),                      # head-group axis last = reduction axis
            in_specs=[
                pl.BlockSpec((1, tq, C), lambda b, qi, g: (b, qi, 0)),   # x (query rows)
                pl.BlockSpec((1, T, C), lambda b, qi, g: (b, 0, 0)),     # x (full seq for K/V)
                pl.BlockSpec((gw, C), lambda b, qi, g: (g, 0)),          # Wq group rows (pre-scaled)
                pl.BlockSpec((1, 1, gw), lambda b, qi, g: (g, 0, 0)),    # bq group slice
                pl.BlockSpec((gw, C), lambda b, qi, g: (g, 0)),          # Wk group rows (no bias)
                pl.BlockSpec((gw, C), lambda b, qi, g: (g, 0)),          # Wv group rows
                pl.BlockSpec((1, 1, gw), lambda b, qi, g: (g, 0, 0)),    # bv group slice
                pl.BlockSpec((gw, C), lambda b, qi, g: (g, 0)),          # Wo^T group rows
                pl.BlockSpec((1, C), lambda b, qi, g: (0, 0)),           # bo
            ],
            out_specs=out_specs,
            scratch_shapes=[pltpu.VMEM((tq, C), jnp.float32)],           # f32 output accumulator
        ),
        compiler_params=pltpu.CompilerParams(
            dimension_semantics=("parallel", "parallel", "arbitrary"),
            vmem_limit_bytes=_vmem_limit_bytes(T, tq, C, gw, compute_dtype.itemsize,
                                               heads_per_group, return_qk),
        ),
    )(x_c, x_c, wq_c, bq_g, wk_c, wv_c, bv_g, wot_c, bo_2)


def _reference(x, mask, params, n_head):
    """Plain-JAX reference mirroring the PyTorch forward."""
    wq, bq, wk, wv, bv, wo, bo = params
    B, T, C = x.shape
    hd = C // n_head
    scale = hd ** (-0.25)
    q = x @ wq.T + bq
    k = x @ wk.T
    v = x @ wv.T + bv
    qh = q.reshape(B, T, n_head, hd).transpose(0, 2, 1, 3) * scale
    kh = k.reshape(B, T, n_head, hd).transpose(0, 2, 3, 1) * scale
    vh = v.reshape(B, T, n_head, hd).transpose(0, 2, 1, 3)
    qk = qh @ kh
    if mask is not None:
        qk = qk + mask[:T, :T]
    qk = qk.astype(jnp.float32)
    w = jax.nn.softmax(qk, axis=-1).astype(q.dtype)
    wv_ = (w @ vh).transpose(0, 2, 1, 3).reshape(B, T, C)
    return wv_ @ wo.T + bo, qk


if __name__ == "__main__":
    B, T, C, n_head = 2, 16, 32, 4

    key = jax.random.PRNGKey(0)
    ks = jax.random.split(key, 8)
    x = jax.random.normal(ks[0], (B, T, C), dtype=jnp.float32)
    wq = jax.random.normal(ks[1], (C, C), dtype=jnp.float32) * 0.1
    bq = jax.random.normal(ks[2], (C,), dtype=jnp.float32) * 0.1
    wk = jax.random.normal(ks[3], (C, C), dtype=jnp.float32) * 0.1
    wv = jax.random.normal(ks[4], (C, C), dtype=jnp.float32) * 0.1
    bv = jax.random.normal(ks[5], (C,), dtype=jnp.float32) * 0.1
    wo = jax.random.normal(ks[6], (C, C), dtype=jnp.float32) * 0.1
    bo = jax.random.normal(ks[7], (C,), dtype=jnp.float32) * 0.1
    params = (wq, bq, wk, wv, bv, wo, bo)

    # Whisper-style causal mask for the reference (generated in-kernel on the Pallas side).
    causal_mask = jnp.triu(jnp.full((T, T), -jnp.inf, dtype=jnp.float32), k=1)
    ref_out, ref_qk = _reference(x, causal_mask, params, n_head)

    # (A) f32 compute, single q-tile, all heads in one group: strict check.
    out_a, qk_a = multi_head_attention(x, params, n_head, causal=True,
                                       compute_dtype=jnp.float32)
    jax.block_until_ready((out_a, qk_a))
    np.testing.assert_allclose(np.asarray(out_a), np.asarray(ref_out), rtol=1e-4, atol=1e-4)
    np.testing.assert_allclose(np.asarray(qk_a), np.asarray(ref_qk), rtol=1e-4, atol=1e-4)

    # (B) f32 compute with q-tiling (block_q=8) and head grouping (2 heads/group): strict check.
    out_b, qk_b = multi_head_attention(x, params, n_head, causal=True,
                                       compute_dtype=jnp.float32,
                                       block_q=8, heads_per_group=2)
    jax.block_until_ready((out_b, qk_b))
    np.testing.assert_allclose(np.asarray(out_b), np.asarray(ref_out), rtol=1e-4, atol=1e-4)
    np.testing.assert_allclose(np.asarray(qk_b), np.asarray(ref_qk), rtol=1e-4, atol=1e-4)

    # (C) default bf16 MXU path, qk output disabled: loose sanity check (f32 accumulation).
    out_c = multi_head_attention(x, params, n_head, causal=True, return_qk=False,
                                 block_q=8, heads_per_group=2)
    jax.block_until_ready(out_c)
    np.testing.assert_allclose(np.asarray(out_c), np.asarray(ref_out), rtol=1e-1, atol=1e-1)

    print("KERNEL_OK")
</pallas_src>

<mosaic_0001>
module attributes {stable_mosaic.version = 11 : i64} {
  func.func @_mha_kernel(%arg0: i32, %arg1: i32, %arg2: i32, %arg3: memref<1x16x32xf32, #tpu.memory_space<vmem>>, %arg4: memref<1x16x32xf32, #tpu.memory_space<vmem>>, %arg5: memref<32x32xf32, #tpu.memory_space<vmem>>, %arg6: memref<1x1x32xf32, #tpu.memory_space<vmem>>, %arg7: memref<32x32xf32, #tpu.memory_space<vmem>>, %arg8: memref<32x32xf32, #tpu.memory_space<vmem>>, %arg9: memref<1x1x32xf32, #tpu.memory_space<vmem>>, %arg10: memref<32x32xf32, #tpu.memory_space<vmem>>, %arg11: memref<1x32xf32, #tpu.memory_space<vmem>>, %arg12: memref<1x16x32xf32, #tpu.memory_space<vmem>>, %arg13: memref<1x4x16x16xf32, #tpu.memory_space<vmem>>, %arg14: memref<16x32xf32, #tpu.memory_space<vmem>>) attributes {dimension_semantics = [#tpu.dimension_semantics<parallel>, #tpu.dimension_semantics<parallel>, #tpu.dimension_semantics<arbitrary>], iteration_bounds = array<i64: 2, 1, 1>, scalar_prefetch = 0 : i64, scratch_operands = 1 : i64, tpu.core_type = #tpu.core_type<tc>, window_params = [{transform_indices = @transform_0, window_bounds = array<i64: 1, 16, 32>}, {transform_indices = @transform_1, window_bounds = array<i64: 1, 16, 32>}, {transform_indices = @transform_2, window_bounds = array<i64: 32, 32>}, {transform_indices = @transform_3, window_bounds = array<i64: 1, 1, 32>}, {transform_indices = @transform_4, window_bounds = array<i64: 32, 32>}, {transform_indices = @transform_5, window_bounds = array<i64: 32, 32>}, {transform_indices = @transform_6, window_bounds = array<i64: 1, 1, 32>}, {transform_indices = @transform_7, window_bounds = array<i64: 32, 32>}, {pipeline_mode = #tpu.pipeline_mode<synchronous>, transform_indices = @transform_8, window_bounds = array<i64: 1, 32>}, {transform_indices = @transform_9, window_bounds = array<i64: 1, 16, 32>}, {transform_indices = @transform_10, window_bounds = array<i64: 1, 4, 16, 16>}]} {
    %c0 = arith.constant 0 : index
    %c0_0 = arith.constant 0 : index
    %c0_1 = arith.constant 0 : index
    %0 = vector.load %arg3[%c0, %c0_0, %c0_1] : memref<1x16x32xf32, #tpu.memory_space<vmem>>, vector<1x16x32xf32>
    %1 = vector.shape_cast %0 : vector<1x16x32xf32> to vector<16x32xf32>
    %c0_2 = arith.constant 0 : index
    %c0_3 = arith.constant 0 : index
    %c0_4 = arith.constant 0 : index
    %2 = vector.load %arg4[%c0_2, %c0_3, %c0_4] : memref<1x16x32xf32, #tpu.memory_space<vmem>>, vector<1x16x32xf32>
    %3 = vector.shape_cast %2 : vector<1x16x32xf32> to vector<16x32xf32>
    %c0_5 = arith.constant 0 : index
    %c0_6 = arith.constant 0 : index
    %4 = vector.load %arg5[%c0_5, %c0_6] : memref<32x32xf32, #tpu.memory_space<vmem>>, vector<32x32xf32>
    %cst = arith.constant dense<0.000000e+00> : vector<16x32xf32>
    %5 = tpu.matmul %1, %4, %cst {dimension_numbers = #tpu.dot_dimension_numbers<[1], [1], [0], [0], [0, 0, 1, 0], [], []>} : vector<16x32xf32>, vector<32x32xf32>, vector<16x32xf32> -> vector<16x32xf32>
    %c0_7 = arith.constant 0 : index
    %c0_8 = arith.constant 0 : index
    %c0_9 = arith.constant 0 : index
    %6 = vector.load %arg6[%c0_7, %c0_8, %c0_9] : memref<1x1x32xf32, #tpu.memory_space<vmem>>, vector<1x1x32xf32>
    %7 = vector.shape_cast %6 : vector<1x1x32xf32> to vector<1x32xf32>
    %8 = vector.broadcast %7 : vector<1x32xf32> to vector<16x32xf32>
    %9 = arith.addf %5, %8 : vector<16x32xf32>
    %c0_10 = arith.constant 0 : index
    %c0_11 = arith.constant 0 : index
    %10 = vector.load %arg7[%c0_10, %c0_11] : memref<32x32xf32, #tpu.memory_space<vmem>>, vector<32x32xf32>
    %cst_12 = arith.constant dense<0.000000e+00> : vector<16x32xf32>
    %11 = tpu.matmul %3, %10, %cst_12 {dimension_numbers = #tpu.dot_dimension_numbers<[1], [1], [0], [0], [0, 0, 1, 0], [], []>} : vector<16x32xf32>, vector<32x32xf32>, vector<16x32xf32> -> vector<16x32xf32>
    %c0_13 = arith.constant 0 : index
    %c0_14 = arith.constant 0 : index
    %12 = vector.load %arg8[%c0_13, %c0_14] : memref<32x32xf32, #tpu.memory_space<vmem>>, vector<32x32xf32>
    %cst_15 = arith.constant dense<0.000000e+00> : vector<16x32xf32>
    %13 = tpu.matmul %3, %12, %cst_15 {dimension_numbers = #tpu.dot_dimension_numbers<[1], [1], [0], [0], [0, 0, 1, 0], [], []>} : vector<16x32xf32>, vector<32x32xf32>, vector<16x32xf32> -> vector<16x32xf32>
    %c0_16 = arith.constant 0 : index
    %c0_17 = arith.constant 0 : index
    %c0_18 = arith.constant 0 : index
    %14 = vector.load %arg9[%c0_16, %c0_17, %c0_18] : memref<1x1x32xf32, #tpu.memory_space<vmem>>, vector<1x1x32xf32>
    %15 = vector.shape_cast %14 : vector<1x1x32xf32> to vector<1x32xf32>
    %16 = vector.broadcast %15 : vector<1x32xf32> to vector<16x32xf32>
    %17 = arith.addf %13, %16 : vector<16x32xf32>
    %18 = tpu.iota {dimensions = array<i32: 0>} : vector<16x16xi32>
    %c16_i32 = arith.constant 16 : i32
    %19 = arith.muli %arg1, %c16_i32 : i32
    %20 = vector.broadcast %19 : i32 to vector<16x16xi32>
    %21 = arith.addi %18, %20 : vector<16x16xi32>
    %22 = tpu.iota {dimensions = array<i32: 1>} : vector<16x16xi32>
    %23 = arith.cmpi sgt, %22, %21 : vector<16x16xi32>
    %cst_19 = arith.constant 0xFF800000 : f32
    %cst_20 = arith.constant 0.000000e+00 : f32
    %24 = vector.broadcast %cst_19 : f32 to vector<16x16xf32>
    %25 = vector.broadcast %cst_20 : f32 to vector<16x16xf32>
    %26 = arith.select %23, %24, %25 : vector<16x16xi1>, vector<16x16xf32>
    %27 = vector.extract_strided_slice %9 {offsets = [0, 0], sizes = [16, 8], strides = [1, 1]} : vector<16x32xf32> to vector<16x8xf32>
    %28 = vector.extract_strided_slice %11 {offsets = [0, 0], sizes = [16, 8], strides = [1, 1]} : vector<16x32xf32> to vector<16x8xf32>
    %cst_21 = arith.constant dense<0.000000e+00> : vector<16x16xf32>
    %29 = tpu.matmul %27, %28, %cst_21 {dimension_numbers = #tpu.dot_dimension_numbers<[1], [1], [0], [0], [0, 0, 1, 0], [], []>} : vector<16x8xf32>, vector<16x8xf32>, vector<16x16xf32> -> vector<16x16xf32>
    %30 = arith.addf %29, %26 : vector<16x16xf32>
    %c0_22 = arith.constant 0 : index
    %c0_23 = arith.constant 0 : index
    %c0_24 = arith.constant 0 : index
    %c0_25 = arith.constant 0 : index
    %31 = vector.load %arg13[%c0_22, %c0_23, %c0_24, %c0_25] : memref<1x4x16x16xf32, #tpu.memory_space<vmem>>, vector<1x1x16x16xf32>
    %32 = vector.shape_cast %31 : vector<1x1x16x16xf32> to vector<16x16xf32>
    %33 = vector.shape_cast %30 : vector<16x16xf32> to vector<1x1x16x16xf32>
    tpu.vector_store %arg13[%c0_22, %c0_23, %c0_24, %c0_25], %33 {strides = array<i32>} : memref<1x4x16x16xf32, #tpu.memory_space<vmem>>, vector<1x1x16x16xf32>,
    %cst_26 = arith.constant dense<0xFF800000> : vector<16xf32>
    %34 = vector.multi_reduction <maximumf>, %30, %cst_26 [1] : vector<16x16xf32> to vector<16xf32>
    %35 = vector.shape_cast %34 : vector<16xf32> to vector<16x1xf32>
    %36 = vector.broadcast %35 : vector<16x1xf32> to vector<16x16xf32>
    %37 = arith.subf %30, %36 : vector<16x16xf32>
    %38 = math.exp %37 : vector<16x16xf32>
    %cst_27 = arith.constant dense<0.000000e+00> : vector<16xf32>
    %39 = vector.multi_reduction <add>, %38, %cst_27 [1] : vector<16x16xf32> to vector<16xf32>
    %40 = vector.shape_cast %39 : vector<16xf32> to vector<16x1xf32>
    %cst_28 = arith.constant 1.000000e+00 : f32
    %41 = vector.broadcast %cst_28 : f32 to vector<16x1xf32>
    %42 = arith.divf %41, %40 : vector<16x1xf32>
    %43 = vector.broadcast %42 : vector<16x1xf32> to vector<16x16xf32>
    %44 = arith.mulf %38, %43 : vector<16x16xf32>
    %45 = vector.extract_strided_slice %17 {offsets = [0, 0], sizes = [16, 8], strides = [1, 1]} : vector<16x32xf32> to vector<16x8xf32>
    %cst_29 = arith.constant dense<0.000000e+00> : vector<16x8xf32>
    %46 = tpu.matmul %44, %45, %cst_29 {dimension_numbers = #tpu.dot_dimension_numbers<[1], [0], [0], [1], [0, 0, 1, 1], [], []>} : vector<16x16xf32>, vector<16x8xf32>, vector<16x8xf32> -> vector<16x8xf32>
    %47 = vector.extract_strided_slice %9 {offsets = [0, 8], sizes = [16, 8], strides = [1, 1]} : vector<16x32xf32> to vector<16x8xf32>
    %48 = vector.extract_strided_slice %11 {offsets = [0, 8], sizes = [16, 8], strides = [1, 1]} : vector<16x32xf32> to vector<16x8xf32>
    %cst_30 = arith.constant dense<0.000000e+00> : vector<16x16xf32>
    %49 = tpu.matmul %47, %48, %cst_30 {dimension_numbers = #tpu.dot_dimension_numbers<[1], [1], [0], [0], [0, 0, 1, 0], [], []>} : vector<16x8xf32>, vector<16x8xf32>, vector<16x16xf32> -> vector<16x16xf32>
    %50 = arith.addf %49, %26 : vector<16x16xf32>
    %c0_31 = arith.constant 0 : index
    %c1 = arith.constant 1 : index
    %c0_32 = arith.constant 0 : index
    %c0_33 = arith.constant 0 : index
    %51 = vector.load %arg13[%c0_31, %c1, %c0_32, %c0_33] : memref<1x4x16x16xf32, #tpu.memory_space<vmem>>, vector<1x1x16x16xf32>
    %52 = vector.shape_cast %51 : vector<1x1x16x16xf32> to vector<16x16xf32>
    %53 = vector.shape_cast %50 : vector<16x16xf32> to vector<1x1x16x16xf32>
    tpu.vector_store %arg13[%c0_31, %c1, %c0_32, %c0_33], %53 {strides = array<i32>} : memref<1x4x16x16xf32, #tpu.memory_space<vmem>>, vector<1x1x16x16xf32>,
    %cst_34 = arith.constant dense<0xFF800000> : vector<16xf32>
    %54 = vector.multi_reduction <maximumf>, %50, %cst_34 [1] : vector<16x16xf32> to vector<16xf32>
    %55 = vector.shape_cast %54 : vector<16xf32> to vector<16x1xf32>
    %56 = vector.broadcast %55 : vector<16x1xf32> to vector<16x16xf32>
    %57 = arith.subf %50, %56 : vector<16x16xf32>
    %58 = math.exp %57 : vector<16x16xf32>
    %cst_35 = arith.constant dense<0.000000e+00> : vector<16xf32>
    %59 = vector.multi_reduction <add>, %58, %cst_35 [1] : vector<16x16xf32> to vector<16xf32>
    %60 = vector.shape_cast %59 : vector<16xf32> to vector<16x1xf32>
    %cst_36 = arith.constant 1.000000e+00 : f32
    %61 = vector.broadcast %cst_36 : f32 to vector<16x1xf32>
    %62 = arith.divf %61, %60 : vector<16x1xf32>
    %63 = vector.broadcast %62 : vector<16x1xf32> to vector<16x16xf32>
    %64 = arith.mulf %58, %63 : vector<16x16xf32>
    %65 = vector.extract_strided_slice %17 {offsets = [0, 8], sizes = [16, 8], strides = [1, 1]} : vector<16x32xf32> to vector<16x8xf32>
    %cst_37 = arith.constant dense<0.000000e+00> : vector<16x8xf32>
    %66 = tpu.matmul %64, %65, %cst_37 {dimension_numbers = #tpu.dot_dimension_numbers<[1], [0], [0], [1], [0, 0, 1, 1], [], []>} : vector<16x16xf32>, vector<16x8xf32>, vector<16x8xf32> -> vector<16x8xf32>
    %67 = vector.extract_strided_slice %9 {offsets = [0, 16], sizes = [16, 8], strides = [1, 1]} : vector<16x32xf32> to vector<16x8xf32>
    %68 = vector.extract_strided_slice %11 {offsets = [0, 16], sizes = [16, 8], strides = [1, 1]} : vector<16x32xf32> to vector<16x8xf32>
    %cst_38 = arith.constant dense<0.000000e+00> : vector<16x16xf32>
    %69 = tpu.matmul %67, %68, %cst_38 {dimension_numbers = #tpu.dot_dimension_numbers<[1], [1], [0], [0], [0, 0, 1, 0], [], []>} : vector<16x8xf32>, vector<16x8xf32>, vector<16x16xf32> -> vector<16x16xf32>
    %70 = arith.addf %69, %26 : vector<16x16xf32>
    %c0_39 = arith.constant 0 : index
    %c2 = arith.constant 2 : index
    %c0_40 = arith.constant 0 : index
    %c0_41 = arith.constant 0 : index
    %71 = vector.load %arg13[%c0_39, %c2, %c0_40, %c0_41] : memref<1x4x16x16xf32, #tpu.memory_space<vmem>>, vector<1x1x16x16xf32>
    %72 = vector.shape_cast %71 : vector<1x1x16x16xf32> to vector<16x16xf32>
    %73 = vector.shape_cast %70 : vector<16x16xf32> to vector<1x1x16x16xf32>
    tpu.vector_store %arg13[%c0_39, %c2, %c0_40, %c0_41], %73 {strides = array<i32>} : memref<1x4x16x16xf32, #tpu.memory_space<vmem>>, vector<1x1x16x16xf32>,
    %cst_42 = arith.constant dense<0xFF800000> : vector<16xf32>
    %74 = vector.multi_reduction <maximumf>, %70, %cst_42 [1] : vector<16x16xf32> to vector<16xf32>
    %75 = vector.shape_cast %74 : vector<16xf32> to vector<16x1xf32>
    %76 = vector.broadcast %75 : vector<16x1xf32> to vector<16x16xf32>
    %77 = arith.subf %70, %76 : vector<16x16xf32>
    %78 = math.exp %77 : vector<16x16xf32>
    %cst_43 = arith.constant dense<0.000000e+00> : vector<16xf32>
    %79 = vector.multi_reduction <add>, %78, %cst_43 [1] : vector<16x16xf32> to vector<16xf32>
    %80 = vector.shape_cast %79 : vector<16xf32> to vector<16x1xf32>
    %cst_44 = arith.constant 1.000000e+00 : f32
    %81 = vector.broadcast %cst_44 : f32 to vector<16x1xf32>
    %82 = arith.divf %81, %80 : vector<16x1xf32>
    %83 = vector.broadcast %82 : vector<16x1xf32> to vector<16x16xf32>
    %84 = arith.mulf %78, %83 : vector<16x16xf32>
    %85 = vector.extract_strided_slice %17 {offsets = [0, 16], sizes = [16, 8], strides = [1, 1]} : vector<16x32xf32> to vector<16x8xf32>
    %cst_45 = arith.constant dense<0.000000e+00> : vector<16x8xf32>
    %86 = tpu.matmul %84, %85, %cst_45 {dimension_numbers = #tpu.dot_dimension_numbers<[1], [0], [0], [1], [0, 0, 1, 1], [], []>} : vector<16x16xf32>, vector<16x8xf32>, vector<16x8xf32> -> vector<16x8xf32>
    %87 = vector.extract_strided_slice %9 {offsets = [0, 24], sizes = [16, 8], strides = [1, 1]} : vector<16x32xf32> to vector<16x8xf32>
    %88 = vector.extract_strided_slice %11 {offsets = [0, 24], sizes = [16, 8], strides = [1, 1]} : vector<16x32xf32> to vector<16x8xf32>
    %cst_46 = arith.constant dense<0.000000e+00> : vector<16x16xf32>
    %89 = tpu.matmul %87, %88, %cst_46 {dimension_numbers = #tpu.dot_dimension_numbers<[1], [1], [0], [0], [0, 0, 1, 0], [], []>} : vector<16x8xf32>, vector<16x8xf32>, vector<16x16xf32> -> vector<16x16xf32>
    %90 = arith.addf %89, %26 : vector<16x16xf32>
    %c0_47 = arith.constant 0 : index
    %c3 = arith.constant 3 : index
    %c0_48 = arith.constant 0 : index
    %c0_49 = arith.constant 0 : index
    %91 = vector.load %arg13[%c0_47, %c3, %c0_48, %c0_49] : memref<1x4x16x16xf32, #tpu.memory_space<vmem>>, vector<1x1x16x16xf32>
    %92 = vector.shape_cast %91 : vector<1x1x16x16xf32> to vector<16x16xf32>
    %93 = vector.shape_cast %90 : vector<16x16xf32> to vector<1x1x16x16xf32>
    tpu.vector_store %arg13[%c0_47, %c3, %c0_48, %c0_49], %93 {strides = array<i32>} : memref<1x4x16x16xf32, #tpu.memory_space<vmem>>, vector<1x1x16x16xf32>,
    %cst_50 = arith.constant dense<0xFF800000> : vector<16xf32>
    %94 = vector.multi_reduction <maximumf>, %90, %cst_50 [1] : vector<16x16xf32> to vector<16xf32>
    %95 = vector.shape_cast %94 : vector<16xf32> to vector<16x1xf32>
    %96 = vector.broadcast %95 : vector<16x1xf32> to vector<16x16xf32>
    %97 = arith.subf %90, %96 : vector<16x16xf32>
    %98 = math.exp %97 : vector<16x16xf32>
    %cst_51 = arith.constant dense<0.000000e+00> : vector<16xf32>
    %99 = vector.multi_reduction <add>, %98, %cst_51 [1] : vector<16x16xf32> to vector<16xf32>
    %100 = vector.shape_cast %99 : vector<16xf32> to vector<16x1xf32>
    %cst_52 = arith.constant 1.000000e+00 : f32
    %101 = vector.broadcast %cst_52 : f32 to vector<16x1xf32>
    %102 = arith.divf %101, %100 : vector<16x1xf32>
    %103 = vector.broadcast %102 : vector<16x1xf32> to vector<16x16xf32>
    %104 = arith.mulf %98, %103 : vector<16x16xf32>
    %105 = vector.extract_strided_slice %17 {offsets = [0, 24], sizes = [16, 8], strides = [1, 1]} : vector<16x32xf32> to vector<16x8xf32>
    %cst_53 = arith.constant dense<0.000000e+00> : vector<16x8xf32>
    %106 = tpu.matmul %104, %105, %cst_53 {dimension_numbers = #tpu.dot_dimension_numbers<[1], [0], [0], [1], [0, 0, 1, 1], [], []>} : vector<16x16xf32>, vector<16x8xf32>, vector<16x8xf32> -> vector<16x8xf32>
    %107 = tpu.concatenate %46, %66, %86, %106 in 1 : vector<16x8xf32>, vector<16x8xf32>, vector<16x8xf32>, vector<16x8xf32> -> vector<16x32xf32>
    %c0_54 = arith.constant 0 : index
    %c0_55 = arith.constant 0 : index
    %108 = vector.load %arg10[%c0_54, %c0_55] : memref<32x32xf32, #tpu.memory_space<vmem>>, vector<32x32xf32>
    %cst_56 = arith.constant dense<0.000000e+00> : vector<16x32xf32>
    %109 = tpu.matmul %107, %108, %cst_56 {dimension_numbers = #tpu.dot_dimension_numbers<[1], [0], [0], [1], [0, 0, 1, 1], [], []>} : vector<16x32xf32>, vector<32x32xf32>, vector<16x32xf32> -> vector<16x32xf32>
    %c0_i32 = arith.constant 0 : i32
    %110 = arith.cmpi eq, %arg2, %c0_i32 : i32
    %111 = arith.extui %110 : i1 to i32
    %c0_i32_57 = arith.constant 0 : i32
    %112 = arith.cmpi ne, %111, %c0_i32_57 : i32
    scf.if %112 {
      %c0_62 = arith.constant 0 : index
      %c0_63 = arith.constant 0 : index
      %119 = vector.load %arg14[%c0_62, %c0_63] : memref<16x32xf32, #tpu.memory_space<vmem>>, vector<16x32xf32>
      tpu.vector_store %arg14[%c0_62, %c0_63], %109 {strides = array<i32>} : memref<16x32xf32, #tpu.memory_space<vmem>>, vector<16x32xf32>,
    } else {
    }
    %c0_i32_58 = arith.constant 0 : i32
    %113 = arith.cmpi sgt, %arg2, %c0_i32_58 : i32
    %114 = arith.extui %113 : i1 to i32
    %c0_i32_59 = arith.constant 0 : i32
    %115 = arith.cmpi ne, %114, %c0_i32_59 : i32
    scf.if %115 {
      %c0_62 = arith.constant 0 : index
      %c0_63 = arith.constant 0 : index
      %119 = vector.load %arg14[%c0_62, %c0_63] : memref<16x32xf32, #tpu.memory_space<vmem>>, vector<16x32xf32>
      %120 = arith.addf %119, %109 : vector<16x32xf32>
      %c0_64 = arith.constant 0 : index
      %c0_65 = arith.constant 0 : index
      %121 = vector.load %arg14[%c0_64, %c0_65] : memref<16x32xf32, #tpu.memory_space<vmem>>, vector<16x32xf32>
      tpu.vector_store %arg14[%c0_64, %c0_65], %120 {strides = array<i32>} : memref<16x32xf32, #tpu.memory_space<vmem>>, vector<16x32xf32>,
    } else {
    }
    %c0_i32_60 = arith.constant 0 : i32
    %116 = arith.cmpi eq, %arg2, %c0_i32_60 : i32
    %117 = arith.extui %116 : i1 to i32
    %c0_i32_61 = arith.constant 0 : i32
    %118 = arith.cmpi ne, %117, %c0_i32_61 : i32
    scf.if %118 {
      %c0_62 = arith.constant 0 : index
      %c0_63 = arith.constant 0 : index
      %119 = vector.load %arg14[%c0_62, %c0_63] : memref<16x32xf32, #tpu.memory_space<vmem>>, vector<16x32xf32>
      %c0_64 = arith.constant 0 : index
      %c0_65 = arith.constant 0 : index
      %120 = vector.load %arg11[%c0_64, %c0_65] : memref<1x32xf32, #tpu.memory_space<vmem>>, vector<1x32xf32>
      %121 = vector.broadcast %120 : vector<1x32xf32> to vector<16x32xf32>
      %122 = arith.addf %119, %121 : vector<16x32xf32>
      %c0_66 = arith.constant 0 : index
      %c0_67 = arith.constant 0 : index
      %c0_68 = arith.constant 0 : index
      %123 = vector.load %arg12[%c0_66, %c0_67, %c0_68] : memref<1x16x32xf32, #tpu.memory_space<vmem>>, vector<1x16x32xf32>
      %124 = vector.shape_cast %123 : vector<1x16x32xf32> to vector<16x32xf32>
      %125 = vector.shape_cast %122 : vector<16x32xf32> to vector<1x16x32xf32>
      tpu.vector_store %arg12[%c0_66, %c0_67, %c0_68], %125 {strides = array<i32>} : memref<1x16x32xf32, #tpu.memory_space<vmem>>, vector<1x16x32xf32>,
    } else {
    }
    return
  }
  func.func @transform_0(%arg0: i32, %arg1: i32, %arg2: i32) -> (i32, i32, i32) {
    %c0_i32 = arith.constant 0 : i32
    %c0_i32_0 = arith.constant 0 : i32
    return %arg0, %arg1, %c0_i32 : i32, i32, i32
  }
  func.func @transform_1(%arg0: i32, %arg1: i32, %arg2: i32) -> (i32, i32, i32) {
    %c0_i32 = arith.constant 0 : i32
    %c0_i32_0 = arith.constant 0 : i32
    %c0_i32_1 = arith.constant 0 : i32
    return %arg0, %c0_i32, %c0_i32_0 : i32, i32, i32
  }
  func.func @transform_2(%arg0: i32, %arg1: i32, %arg2: i32) -> (i32, i32) {
    %c0_i32 = arith.constant 0 : i32
    %c0_i32_0 = arith.constant 0 : i32
    return %arg2, %c0_i32 : i32, i32
  }
  func.func @transform_3(%arg0: i32, %arg1: i32, %arg2: i32) -> (i32, i32, i32) {
    %c0_i32 = arith.constant 0 : i32
    %c0_i32_0 = arith.constant 0 : i32
    %c0_i32_1 = arith.constant 0 : i32
    return %arg2, %c0_i32, %c0_i32_0 : i32, i32, i32
  }
  func.func @transform_4(%arg0: i32, %arg1: i32, %arg2: i32) -> (i32, i32) {
    %c0_i32 = arith.constant 0 : i32
    %c0_i32_0 = arith.constant 0 : i32
    return %arg2, %c0_i32 : i32, i32
  }
  func.func @transform_5(%arg0: i32, %arg1: i32, %arg2: i32) -> (i32, i32) {
    %c0_i32 = arith.constant 0 : i32
    %c0_i32_0 = arith.constant 0 : i32
    return %arg2, %c0_i32 : i32, i32
  }
  func.func @transform_6(%arg0: i32, %arg1: i32, %arg2: i32) -> (i32, i32, i32) {
    %c0_i32 = arith.constant 0 : i32
    %c0_i32_0 = arith.constant 0 : i32
    %c0_i32_1 = arith.constant 0 : i32
    return %arg2, %c0_i32, %c0_i32_0 : i32, i32, i32
  }
  func.func @transform_7(%arg0: i32, %arg1: i32, %arg2: i32) -> (i32, i32) {
    %c0_i32 = arith.constant 0 : i32
    %c0_i32_0 = arith.constant 0 : i32
    return %arg2, %c0_i32 : i32, i32
  }
  func.func @transform_8(%arg0: i32, %arg1: i32, %arg2: i32) -> (i32, i32) {
    %c0_i32 = arith.constant 0 : i32
    %c0_i32_0 = arith.constant 0 : i32
    %c0_i32_1 = arith.constant 0 : i32
    return %c0_i32, %c0_i32_0 : i32, i32
  }
  func.func @transform_9(%arg0: i32, %arg1: i32, %arg2: i32) -> (i32, i32, i32) {
    %c0_i32 = arith.constant 0 : i32
    %c0_i32_0 = arith.constant 0 : i32
    return %arg0, %arg1, %c0_i32 : i32, i32, i32
  }
  func.func @transform_10(%arg0: i32, %arg1: i32, %arg2: i32) -> (i32, i32, i32, i32) {
    %c0_i32 = arith.constant 0 : i32
    %c0_i32_0 = arith.constant 0 : i32
    return %arg0, %arg2, %arg1, %c0_i32 : i32, i32, i32, i32
  }
}

</mosaic_0001>

<llo_original>
// kernel: tpu_custom_call.1
$region0: #{tpu_custom_call.1}
  #allocation0 [shape = 'u32[]', space=smem, size = 0x4, offset = 0x4, fixed_abs, tag = 'smem constant byte address 0x4 - core index']
  #allocation1 [shape = 'u32[144,128]{1,0:T(1,128)}', space=vmem, size = 0x12000, scoped, tag = 'internal scratch']
  #allocation2 [shape = 'f32[16,32]{1,0:T(8,128)}', space=vmem, size = 0x2000, scoped, tag = 'scratch operand']
  %s0 = inlined_call_operand.hbm [shape: f32[2,16,32], index: 0, kind: input, shape index: {}]
  %s1 = inlined_call_operand.hbm [shape: f32[2,16,32], index: 1, kind: input, shape index: {}]
  %s2 = inlined_call_operand.hbm [shape: f32[32,32], index: 2, kind: input, shape index: {}]
  %s3 = inlined_call_operand.vmem [shape: f32[1,1,32], index: 3, kind: input, shape index: {}]
  %s4 = inlined_call_operand.hbm [shape: f32[32,32], index: 4, kind: input, shape index: {}]
  %s5 = inlined_call_operand.hbm [shape: f32[32,32], index: 5, kind: input, shape index: {}]
  %s6 = inlined_call_operand.vmem [shape: f32[1,1,32], index: 6, kind: input, shape index: {}]
  %s7 = inlined_call_operand.hbm [shape: f32[32,32], index: 7, kind: input, shape index: {}]
  %s8 = inlined_call_operand.vmem [shape: f32[1,32], index: 8, kind: input, shape index: {}]
  %s9 = inlined_call_operand.hbm [shape: f32[2,16,32], index: 9, kind: output, shape index: {0}]
  %s10 = inlined_call_operand.hbm [shape: f32[2,4,16,16], index: 10, kind: output, shape index: {1}]
  %11 = xla_tuple %s9, %s10
  %s12 = sld [smem:[#allocation0]]
  $region113: #{tpu_custom_call.1} parent=0
    _
  %s14 = ssub.s32 1, %s12
  %s15 = scalar_select 0, %s14, %s12
  $region1: #{tpu_custom_call.1} parent=0
    #allocation3 [shape = 'u8[16384]{0}', space=vmem, size = 0x4000, scoped, tag = 'input window, operand 0']
    #allocation4 [shape = 's32[2]{0}', space=sflag, size = 0x8, scoped, tag = 'scoped memory for tpu_custom_call.1']
    #allocation5 [shape = 's32[2]{0}', space=sflag, size = 0x8, scoped, tag = 'scoped memory for tpu_custom_call.1']
    #allocation6 [shape = 'u8[16384]{0}', space=vmem, size = 0x4000, scoped, tag = 'input window, operand 1']
    #allocation7 [shape = 's32[2]{0}', space=sflag, size = 0x8, scoped, tag = 'scoped memory for tpu_custom_call.1']
    #allocation8 [shape = 'u8[16384]{0}', space=vmem, size = 0x4000, scoped, tag = 'input window, operand 2, single buffered']
    #allocation9 [shape = 'u8[16384]{0}', space=vmem, size = 0x4000, scoped, tag = 'input window, operand 4, single buffered']
    #allocation10 [shape = 's32[1]{0}', space=sflag, size = 0x4, scoped, tag = 'scoped memory for tpu_custom_call.1']
    #allocation11 [shape = 'u8[16384]{0}', space=vmem, size = 0x4000, scoped, tag = 'input window, operand 5, single buffered']
    #allocation12 [shape = 'u8[16384]{0}', space=vmem, size = 0x4000, scoped, tag = 'input window, operand 7, single buffered']
    #allocation13 [shape = 's32[1]{0}', space=sflag, size = 0x4, scoped, tag = 'scoped memory for tpu_custom_call.1']
    #allocation14 [shape = 'u8[16384]{0}', space=vmem, size = 0x4000, scoped, tag = 'output window, operand 0']
    #allocation15 [shape = 'u8[65536]{0}', space=vmem, size = 0x10000, scoped, tag = 'output window, operand 1']
    #allocation16 [shape = 's32[2]{0}', space=sflag, size = 0x8, scoped, tag = 'scoped memory for tpu_custom_call.1']
    %16 = vsyncpa [#allocation4], 0
    %s17 = scalar_lea.sflag [#allocation4], 1
    %18 = vsyncpa %s17, 0
    %19 = vsyncpa [#allocation7], 0
    %s20 = scalar_lea.sflag [#allocation7], 1
    %21 = vsyncpa %s20, 0
    %22 = vsyncpa [#allocation10], 0
    %23 = vsyncpa [#allocation13], 0
    %24 = vsyncpa [#allocation5], 0
    %s25 = scalar_lea.sflag [#allocation5], 1
    %26 = vsyncpa %s25, 0
    %27 = vsyncpa [#allocation16], 0
    %s28 = scalar_lea.sflag [#allocation16], 1
    %29 = vsyncpa %s28, 0
    loop: start=0, step=1, limit=4
    $region2: #{tpu_custom_call.1} parent=1 // loop_pre_header
      _
    $region3: #{tpu_custom_call.1} parent=1 // loop_header
      %s31 = sphi 0, %s35
      %p32 = scmp.ge.s32.totalorder %s31, 4
      %s38 = sphi 0, %s57
      %s39 = sphi 0, %s53
      %s40 = sphi 0, %s49
      %s41 = sphi 0, %s38
      %s42 = sphi 0, %s39
      %s43 = sphi 0, %s40
      %s44 = sphi 0, %s41
      %s45 = sphi 0, %s42
      %s46 = sphi 0, %s43
      %s62 = sphi 0, %s64
      %s65 = sphi 0, %s62
      %s66 = sphi 0, %s65
      %s82 = sphi 0, %s66
      %s88 = sphi 0, %s90
      %s91 = sphi 0, %s88
      %s92 = sphi 0, %s91
      %s108 = sphi 0, %s92
      %s114 = sphi 0, %s116
      %s117 = sphi 0, %s114
      %s118 = sphi 0, %s117
      %s134 = sphi 0, %s118
      %s140 = sphi 0, %s142
      %s143 = sphi 0, %s140
      %s144 = sphi 0, %s143
      %s160 = sphi 0, %s144
      %s166 = sphi 0, %s168
      %s169 = sphi 0, %s166
      %s170 = sphi 0, %s169
      %s186 = sphi 0, %s170
      %s192 = sphi 0, %s194
      %s195 = sphi 0, %s192
      %s196 = sphi 0, %s195
      %s212 = sphi 0, %s196
      %s218 = sphi 0, %s220
      %s221 = sphi 0, %s218
      %s222 = sphi 0, %s221
      %s238 = sphi 0, %s222
      %s244 = sphi 0, %s246
      %s247 = sphi 0, %s244
      %s248 = sphi 0, %s247
      %s264 = sphi 0, %s248
      %s268 = sphi 0, %s268
      %s270 = sphi 0, %s268
      %s271 = sphi 0, %s270
      %s285 = sphi 0, %s271
      %s293 = sphi 0, %s295
      %s296 = sphi 0, %s293
      %s297 = sphi 0, %s296
      %s313 = sphi 0, %s297
      %s323 = sphi 0, %s325
      %s326 = sphi 0, %s323
      %s327 = sphi 0, %s326
      %s343 = sphi 0, %s327
    $region4: #{tpu_custom_call.1} parent=1 // loop_header_branch
      %34 = sbr.rel (%p32) target = $region8
    $region5: #{tpu_custom_call.1} parent=1 // loop_body
      %s36 = ssub.s32 %s31, 1
      %s37 = ssub.s32 %s31, 2
      %s47 = sadd.s32 1, %s40
      %p48 = scmp.ge.s32.totalorder %s47, 1
      %s49 = scalar_select %p48, 0, %s47
      %s50 = sadd.s32 1, %s39
      %s51 = scalar_select %p48, %s50, %s39
      %p52 = scmp.ge.s32.totalorder %s51, 1
      %s53 = scalar_select %p52, 0, %s51
      %s54 = sadd.s32 1, %s38
      %s55 = scalar_select %p52, %s54, %s38
      %p56 = scmp.ge.s32.totalorder %s55, 2
      %s57 = scalar_select %p56, 0, %s55
      %s58 = ssub.s32 %s38, %s57
      %s59 = ssub.s32 %s39, %s53
      %s60 = sor.u32 %s58, %s59
      %p61 = scmp.eq.s32.totalorder %s60, 0
      %s63 = sadd.s32 %s62, 1
      %s64 = scalar_select %p61, %s62, %s63
      %p67 = pneg %p61
      %p68 = scmp.eq.s32.totalorder %s31, 1
      %p69 = por %p67, %p68
      %p70 = scmp.ne.s32.totalorder %s62, %s65
      %p71 = scmp.eq.s32.totalorder %s31, 0
      %p72 = por %p70, %p71
      %p73 = scmp.ne.s32.totalorder %s62, %s65
      %p74 = scmp.eq.s32.totalorder %s36, 1
      %p75 = por %p73, %p74
      %p76 = scmp.ne.s32.totalorder %s65, %s66
      %p77 = scmp.eq.s32.totalorder %s36, 0
      %p78 = por %p76, %p77
      %p79 = scmp.ne.s32.totalorder %s65, %s66
      %p80 = scmp.eq.s32.totalorder %s37, 1
      %p81 = por %p79, %p80
      %p83 = scmp.ne.s32.totalorder %s66, %s82
      %p84 = scmp.eq.s32.totalorder %s37, 0
      %p85 = por %p83, %p84
      %s86 = ssub.s32 %s38, %s57
      %p87 = scmp.eq.s32.totalorder %s86, 0
      %s89 = sadd.s32 %s88, 1
      %s90 = scalar_select %p87, %s88, %s89
      %p93 = pneg %p87
      %p94 = scmp.eq.s32.totalorder %s31, 1
      %p95 = por %p93, %p94
      %p96 = scmp.ne.s32.totalorder %s88, %s91
      %p97 = scmp.eq.s32.totalorder %s31, 0
      %p98 = por %p96, %p97
      %p99 = scmp.ne.s32.totalorder %s88, %s91
      %p100 = scmp.eq.s32.totalorder %s36, 1
      %p101 = por %p99, %p100
      %p102 = scmp.ne.s32.totalorder %s91, %s92
      %p103 = scmp.eq.s32.totalorder %s36, 0
      %p104 = por %p102, %p103
      %p105 = scmp.ne.s32.totalorder %s91, %s92
      %p106 = scmp.eq.s32.totalorder %s37, 1
      %p107 = por %p105, %p106
      %p109 = scmp.ne.s32.totalorder %s92, %s108
      %p110 = scmp.eq.s32.totalorder %s37, 0
      %p111 = por %p109, %p110
      %s112 = ssub.s32 %s40, %s49
      %p113 = scmp.eq.s32.totalorder %s112, 0
      %s115 = sadd.s32 %s114, 1
      %s116 = scalar_select %p113, %s114, %s115
      %p119 = pneg %p113
      %p120 = scmp.eq.s32.totalorder %s31, 1
      %p121 = por %p119, %p120
      %p122 = scmp.ne.s32.totalorder %s114, %s117
      %p123 = scmp.eq.s32.totalorder %s31, 0
      %p124 = por %p122, %p123
      %p125 = scmp.ne.s32.totalorder %s114, %s117
      %p126 = scmp.eq.s32.totalorder %s36, 1
      %p127 = por %p125, %p126
      %p128 = scmp.ne.s32.totalorder %s117, %s118
      %p129 = scmp.eq.s32.totalorder %s36, 0
      %p130 = por %p128, %p129
      %p131 = scmp.ne.s32.totalorder %s117, %s118
      %p132 = scmp.eq.s32.totalorder %s37, 1
      %p133 = por %p131, %p132
      %p135 = scmp.ne.s32.totalorder %s118, %s134
      %p136 = scmp.eq.s32.totalorder %s37, 0
      %p137 = por %p135, %p136
      %s138 = ssub.s32 %s40, %s49
      %p139 = scmp.eq.s32.totalorder %s138, 0
      %s141 = sadd.s32 %s140, 1
      %s142 = scalar_select %p139, %s140, %s141
      %p145 = pneg %p139
      %p146 = scmp.eq.s32.totalorder %s31, 1
      %p147 = por %p145, %p146
      %p148 = scmp.ne.s32.totalorder %s140, %s143
      %p149 = scmp.eq.s32.totalorder %s31, 0
      %p150 = por %p148, %p149
      %p151 = scmp.ne.s32.totalorder %s140, %s143
      %p152 = scmp.eq.s32.totalorder %s36, 1
      %p153 = por %p151, %p152
      %p154 = scmp.ne.s32.totalorder %s143, %s144
      %p155 = scmp.eq.s32.totalorder %s36, 0
      %p156 = por %p154, %p155
      %p157 = scmp.ne.s32.totalorder %s143, %s144
      %p158 = scmp.eq.s32.totalorder %s37, 1
      %p159 = por %p157, %p158
      %p161 = scmp.ne.s32.totalorder %s144, %s160
      %p162 = scmp.eq.s32.totalorder %s37, 0
      %p163 = por %p161, %p162
      %s164 = ssub.s32 %s40, %s49
      %p165 = scmp.eq.s32.totalorder %s164, 0
      %s167 = sadd.s32 %s166, 1
      %s168 = scalar_select %p165, %s166, %s167
      %p171 = pneg %p165
      %p172 = scmp.eq.s32.totalorder %s31, 1
      %p173 = por %p171, %p172
      %p174 = scmp.ne.s32.totalorder %s166, %s169
      %p175 = scmp.eq.s32.totalorder %s31, 0
      %p176 = por %p174, %p175
      %p177 = scmp.ne.s32.totalorder %s166, %s169
      %p178 = scmp.eq.s32.totalorder %s36, 1
      %p179 = por %p177, %p178
      %p180 = scmp.ne.s32.totalorder %s169, %s170
      %p181 = scmp.eq.s32.totalorder %s36, 0
      %p182 = por %p180, %p181
      %p183 = scmp.ne.s32.totalorder %s169, %s170
      %p184 = scmp.eq.s32.totalorder %s37, 1
      %p185 = por %p183, %p184
      %p187 = scmp.ne.s32.totalorder %s170, %s186
      %p188 = scmp.eq.s32.totalorder %s37, 0
      %p189 = por %p187, %p188
      %s190 = ssub.s32 %s40, %s49
      %p191 = scmp.eq.s32.totalorder %s190, 0
      %s193 = sadd.s32 %s192, 1
      %s194 = scalar_select %p191, %s192, %s193
      %p197 = pneg %p191
      %p198 = scmp.eq.s32.totalorder %s31, 1
      %p199 = por %p197, %p198
      %p200 = scmp.ne.s32.totalorder %s192, %s195
      %p201 = scmp.eq.s32.totalorder %s31, 0
      %p202 = por %p200, %p201
      %p203 = scmp.ne.s32.totalorder %s192, %s195
      %p204 = scmp.eq.s32.totalorder %s36, 1
      %p205 = por %p203, %p204
      %p206 = scmp.ne.s32.totalorder %s195, %s196
      %p207 = scmp.eq.s32.totalorder %s36, 0
      %p208 = por %p206, %p207
      %p209 = scmp.ne.s32.totalorder %s195, %s196
      %p210 = scmp.eq.s32.totalorder %s37, 1
      %p211 = por %p209, %p210
      %p213 = scmp.ne.s32.totalorder %s196, %s212
      %p214 = scmp.eq.s32.totalorder %s37, 0
      %p215 = por %p213, %p214
      %s216 = ssub.s32 %s40, %s49
      %p217 = scmp.eq.s32.totalorder %s216, 0
      %s219 = sadd.s32 %s218, 1
      %s220 = scalar_select %p217, %s218, %s219
      %p223 = pneg %p217
      %p224 = scmp.eq.s32.totalorder %s31, 1
      %p225 = por %p223, %p224
      %p226 = scmp.ne.s32.totalorder %s218, %s221
      %p227 = scmp.eq.s32.totalorder %s31, 0
      %p228 = por %p226, %p227
      %p229 = scmp.ne.s32.totalorder %s218, %s221
      %p230 = scmp.eq.s32.totalorder %s36, 1
      %p231 = por %p229, %p230
      %p232 = scmp.ne.s32.totalorder %s221, %s222
      %p233 = scmp.eq.s32.totalorder %s36, 0
      %p234 = por %p232, %p233
      %p235 = scmp.ne.s32.totalorder %s221, %s222
      %p236 = scmp.eq.s32.totalorder %s37, 1
      %p237 = por %p235, %p236
      %p239 = scmp.ne.s32.totalorder %s222, %s238
      %p240 = scmp.eq.s32.totalorder %s37, 0
      %p241 = por %p239, %p240
      %s242 = ssub.s32 %s40, %s49
      %p243 = scmp.eq.s32.totalorder %s242, 0
      %s245 = sadd.s32 %s244, 1
      %s246 = scalar_select %p243, %s244, %s245
      %p249 = pneg %p243
      %p250 = scmp.eq.s32.totalorder %s31, 1
      %p251 = por %p249, %p250
      %p252 = scmp.ne.s32.totalorder %s244, %s247
      %p253 = scmp.eq.s32.totalorder %s31, 0
      %p254 = por %p252, %p253
      %p255 = scmp.ne.s32.totalorder %s244, %s247
      %p256 = scmp.eq.s32.totalorder %s36, 1
      %p257 = por %p255, %p256
      %p258 = scmp.ne.s32.totalorder %s247, %s248
      %p259 = scmp.eq.s32.totalorder %s36, 0
      %p260 = por %p258, %p259
      %p261 = scmp.ne.s32.totalorder %s247, %s248
      %p262 = scmp.eq.s32.totalorder %s37, 1
      %p263 = por %p261, %p262
      %p265 = scmp.ne.s32.totalorder %s248, %s264
      %p266 = scmp.eq.s32.totalorder %s37, 0
      %p267 = por %p265, %p266
      %s269 = sadd.s32 %s268, 1
      %p272 = scmp.eq.s32.totalorder %s31, 1
      %p273 = scmp.ne.s32.totalorder %s268, %s270
      %p274 = scmp.eq.s32.totalorder %s31, 0
      %p275 = por %p273, %p274
      %p276 = scmp.ne.s32.totalorder %s268, %s270
      %p277 = scmp.eq.s32.totalorder %s36, 1
      %p278 = por %p276, %p277
      %p279 = scmp.ne.s32.totalorder %s270, %s271
      %p280 = scmp.eq.s32.totalorder %s36, 0
      %p281 = por %p279, %p280
      %p282 = scmp.ne.s32.totalorder %s270, %s271
      %p283 = scmp.eq.s32.totalorder %s37, 1
      %p284 = por %p282, %p283
      %p286 = scmp.ne.s32.totalorder %s271, %s285
      %p287 = scmp.eq.s32.totalorder %s37, 0
      %p288 = por %p286, %p287
      %s289 = ssub.s32 %s38, %s57
      %s290 = ssub.s32 %s39, %s53
      %s291 = sor.u32 %s289, %s290
      %p292 = scmp.eq.s32.totalorder %s291, 0
      %s294 = sadd.s32 %s293, 1
      %s295 = scalar_select %p292, %s293, %s294
      %p298 = pneg %p292
      %p299 = scmp.eq.s32.totalorder %s31, 1
      %p300 = por %p298, %p299
      %p301 = scmp.ne.s32.totalorder %s293, %s296
      %p302 = scmp.eq.s32.totalorder %s31, 0
      %p303 = por %p301, %p302
      %p304 = scmp.ne.s32.totalorder %s293, %s296
      %p305 = scmp.eq.s32.totalorder %s36, 1
      %p306 = por %p304, %p305
      %p307 = scmp.ne.s32.totalorder %s296, %s297
      %p308 = scmp.eq.s32.totalorder %s36, 0
      %p309 = por %p307, %p308
      %p310 = scmp.ne.s32.totalorder %s296, %s297
      %p311 = scmp.eq.s32.totalorder %s37, 1
      %p312 = por %p310, %p311
      %p314 = scmp.ne.s32.totalorder %s297, %s313
      %p315 = scmp.eq.s32.totalorder %s37, 0
      %p316 = por %p314, %p315
      %s317 = ssub.s32 %s38, %s57
      %s318 = ssub.s32 %s40, %s49
      %s319 = sor.u32 %s317, %s318
      %s320 = ssub.s32 %s39, %s53
      %s321 = sor.u32 %s319, %s320
      %p322 = scmp.eq.s32.totalorder %s321, 0
      %s324 = sadd.s32 %s323, 1
      %s325 = scalar_select %p322, %s323, %s324
      %p328 = pneg %p322
      %p329 = scmp.eq.s32.totalorder %s31, 1
      %p330 = por %p328, %p329
      %p331 = scmp.ne.s32.totalorder %s323, %s326
      %p332 = scmp.eq.s32.totalorder %s31, 0
      %p333 = por %p331, %p332
      %p334 = scmp.ne.s32.totalorder %s323, %s326
      %p335 = scmp.eq.s32.totalorder %s36, 1
      %p336 = por %p334, %p335
      %p337 = scmp.ne.s32.totalorder %s326, %s327
      %p338 = scmp.eq.s32.totalorder %s36, 0
      %p339 = por %p337, %p338
      %p340 = scmp.ne.s32.totalorder %s326, %s327
      %p341 = scmp.eq.s32.totalorder %s37, 1
      %p342 = por %p340, %p341
      %p344 = scmp.ne.s32.totalorder %s327, %s343
      %p345 = scmp.eq.s32.totalorder %s37, 0
      %p346 = por %p344, %p345
      %p347 = scmp.le.s32.totalorder 1, %s31
      %p348 = scmp.lt.s32.totalorder %s31, 3
      %p349 = pnand %p347, %p348
      %p350 = pneg %p349
      // Predicated region
      $region9: #{tpu_custom_call.1} parent=5 // pred_check
        _
      $region10: #{tpu_custom_call.1} parent=5 // pred_check_branch
        %352 = sbr.rel (%p349) target = $region12
      $region11: #{tpu_custom_call.1} parent=5 // pred_region
        %s353 = ssub.s32 %s31, 1
        // Predicated region
        $region13: #{tpu_custom_call.1} parent=11 // pred_check
          %p354 = pneg %p130
        $region14: #{tpu_custom_call.1} parent=11 // pred_check_branch
          %356 = sbr.rel (%p354) target = $region16
        $region15: #{tpu_custom_call.1} parent=11 // pred_region
          %s357 = smul.u32 4, %s43
          %s359 = ssub.s32 512, 512
          %360 = vsyncadd [#allocation7], %s359
          %s361 = smul.addr %s357, 128
          %s362 = scalar_lea.hbm %s2, %s361
          %s363 = sshll.u32 [#allocation8], 4
          %s364 = int_to_ptr.vmem [resolvable:$true] %s363
          %369 = dma.hbm_to_vmem [thread:$0]  %s362, 512, %s364, [#allocation7], 128, 128, 8
        $region16: #{tpu_custom_call.1} parent=11 // pred_fallthru
          _
        // Predicated region
        $region17: #{tpu_custom_call.1} parent=11 // pred_check
          %p370 = pneg %p156
        $region18: #{tpu_custom_call.1} parent=11 // pred_check_branch
          %372 = sbr.rel (%p370) target = $region20
        $region19: #{tpu_custom_call.1} parent=11 // pred_region
          %p373 = scmp.lt.s32.totalorder %s43, 0
          %s374 = scalar_select %p373, %s43, 0
          %s375 = scalar_lea.vmem %s3, %s374
        $region20: #{tpu_custom_call.1} parent=11 // pred_fallthru
          _
        // Predicated region
        $region21: #{tpu_custom_call.1} parent=11 // pred_check
          %p376 = pneg %p182
        $region22: #{tpu_custom_call.1} parent=11 // pred_check_branch
          %378 = sbr.rel (%p376) target = $region24
        $region23: #{tpu_custom_call.1} parent=11 // pred_region
          %s379 = smul.u32 4, %s43
          %s381 = ssub.s32 512, 512
          %382 = vsyncadd [#allocation10], %s381
          %s383 = smul.addr %s379, 128
          %s384 = scalar_lea.hbm %s4, %s383
          %s385 = sshll.u32 [#allocation9], 4
          %s386 = int_to_ptr.vmem [resolvable:$true] %s385
          %391 = dma.hbm_to_vmem [thread:$0]  %s384, 512, %s386, [#allocation10], 128, 128, 8
        $region24: #{tpu_custom_call.1} parent=11 // pred_fallthru
          _
        // Predicated region
        $region25: #{tpu_custom_call.1} parent=11 // pred_check
          %p392 = pneg %p208
        $region26: #{tpu_custom_call.1} parent=11 // pred_check_branch
          %394 = sbr.rel (%p392) target = $region28
        $region27: #{tpu_custom_call.1} parent=11 // pred_region
          %s395 = smul.u32 4, %s43
          %s397 = ssub.s32 512, 512
          %398 = vsyncadd [#allocation10], %s397
          %s399 = smul.addr %s395, 128
          %s400 = scalar_lea.hbm %s5, %s399
          %s401 = sshll.u32 [#allocation11], 4
          %s402 = int_to_ptr.vmem [resolvable:$true] %s401
          %407 = dma.hbm_to_vmem [thread:$0]  %s400, 512, %s402, [#allocation10], 128, 128, 8
        $region28: #{tpu_custom_call.1} parent=11 // pred_fallthru
          _
        // Predicated region
        $region29: #{tpu_custom_call.1} parent=11 // pred_check
          %p408 = pneg %p234
        $region30: #{tpu_custom_call.1} parent=11 // pred_check_branch
          %410 = sbr.rel (%p408) target = $region32
        $region31: #{tpu_custom_call.1} parent=11 // pred_region
          %p411 = scmp.lt.s32.totalorder %s43, 0
          %s412 = scalar_select %p411, %s43, 0
          %s413 = scalar_lea.vmem %s6, %s412
        $region32: #{tpu_custom_call.1} parent=11 // pred_fallthru
          _
        // Predicated region
        $region33: #{tpu_custom_call.1} parent=11 // pred_check
          %p414 = pneg %p260
        $region34: #{tpu_custom_call.1} parent=11 // pred_check_branch
          %416 = sbr.rel (%p414) target = $region36
        $region35: #{tpu_custom_call.1} parent=11 // pred_region
          %s417 = smul.u32 4, %s43
          %s419 = ssub.s32 512, 512
          %420 = vsyncadd [#allocation13], %s419
          %s421 = smul.addr %s417, 128
          %s422 = scalar_lea.hbm %s7, %s421
          %s423 = sshll.u32 [#allocation12], 4
          %s424 = int_to_ptr.vmem [resolvable:$true] %s423
          %429 = dma.hbm_to_vmem [thread:$0]  %s422, 512, %s424, [#allocation13], 128, 128, 8
        $region36: #{tpu_custom_call.1} parent=11 // pred_fallthru
          _
        // Predicated region
        $region37: #{tpu_custom_call.1} parent=11 // pred_check
          %p430 = pneg %p281
        $region38: #{tpu_custom_call.1} parent=11 // pred_check_branch
          %432 = sbr.rel (%p430) target = $region40
        $region39: #{tpu_custom_call.1} parent=11 // pred_region
          _
        $region40: #{tpu_custom_call.1} parent=11 // pred_fallthru
          _
      $region12: #{tpu_custom_call.1} parent=5 // pred_fallthru
        _
      %p433 = scmp.lt.s32.totalorder %s31, 2
      // Predicated region
      $region41: #{tpu_custom_call.1} parent=5 // pred_check
        %p434 = pneg %p433
      $region42: #{tpu_custom_call.1} parent=5 // pred_check_branch
        %436 = sbr.rel (%p434) target = $region44
      $region43: #{tpu_custom_call.1} parent=5 // pred_region
        // Predicated region
        $region45: #{tpu_custom_call.1} parent=43 // pred_check
          %p437 = pneg %p72
        $region46: #{tpu_custom_call.1} parent=43 // pred_check_branch
          %439 = sbr.rel (%p437) target = $region48
        $region47: #{tpu_custom_call.1} parent=43 // pred_region
          %s440 = sand.u32 %s62, 1
          %s441 = scalar_lea.sflag [#allocation4], %s440
          %s442 = sand.u32 %s62, 1
          %s443 = smul.addr %s442, 16
          %s444 = scalar_lea.vmem [#allocation3], %s443
          %s445 = smul.u32 2, %s39
          %s447 = ssub.s32 256, 256
          %448 = vsyncadd %s441, %s447
          %s449 = smul.addr %s38, 2
          %s450 = sadd.s32 %s445, %s449
          %s451 = smul.addr %s450, 128
          %s452 = scalar_lea.hbm %s0, %s451
          %s453 = sshll.u32 %s444, 4
          %s454 = int_to_ptr.vmem [resolvable:$true] %s453
          %459 = dma.hbm_to_vmem [thread:$0]  %s452, 256, %s454, %s441, 128, 128, 8
        $region48: #{tpu_custom_call.1} parent=43 // pred_fallthru
          _
        // Predicated region
        $region49: #{tpu_custom_call.1} parent=43 // pred_check
          %p460 = pneg %p98
        $region50: #{tpu_custom_call.1} parent=43 // pred_check_branch
          %462 = sbr.rel (%p460) target = $region52
        $region51: #{tpu_custom_call.1} parent=43 // pred_region
          %s463 = sand.u32 %s31, 1
          %s464 = scalar_lea.sflag [#allocation7], %s463
          %s465 = sand.u32 %s88, 1
          %s466 = smul.addr %s465, 16
          %s467 = scalar_lea.vmem [#allocation6], %s466
          %s469 = ssub.s32 256, 256
          %470 = vsyncadd %s464, %s469
          %s471 = smul.addr %s38, 2
          %s472 = smul.addr %s471, 128
          %s473 = scalar_lea.hbm %s1, %s472
          %s474 = sshll.u32 %s467, 4
          %s475 = int_to_ptr.vmem [resolvable:$true] %s474
          %480 = dma.hbm_to_vmem [thread:$0]  %s473, 256, %s475, %s464, 128, 128, 8
        $region52: #{tpu_custom_call.1} parent=43 // pred_fallthru
          _
      $region44: #{tpu_custom_call.1} parent=5 // pred_fallthru
        _
      %p481 = scmp.le.s32.totalorder 1, %s31
      %p482 = scmp.lt.s32.totalorder %s31, 3
      %p483 = pnand %p481, %p482
      %p484 = pneg %p483
      // Predicated region
      $region53: #{tpu_custom_call.1} parent=5 // pred_check
        _
      $region54: #{tpu_custom_call.1} parent=5 // pred_check_branch
        %486 = sbr.rel (%p483) target = $region56
      $region55: #{tpu_custom_call.1} parent=5 // pred_region
        %s487 = ssub.s32 %s31, 1
        %s488 = sand.u32 %s65, 1
        %s489 = scalar_lea.sflag [#allocation4], %s488
        %s490 = sand.u32 %s65, 1
        %s491 = smul.addr %s490, 16
        %s492 = scalar_lea.vmem [#allocation3], %s491
        // Predicated region
        $region57: #{tpu_custom_call.1} parent=55 // pred_check
          %p493 = pneg %p78
        $region58: #{tpu_custom_call.1} parent=55 // pred_check_branch
          %495 = sbr.rel (%p493) target = $region60
        $region59: #{tpu_custom_call.1} parent=55 // pred_region
          %496 = dma.done %s489, 256
        $region60: #{tpu_custom_call.1} parent=55 // pred_fallthru
          _
        %s497 = sand.u32 %s36, 1
        %s498 = scalar_lea.sflag [#allocation7], %s497
        %s499 = sand.u32 %s91, 1
        %s500 = smul.addr %s499, 16
        %s501 = scalar_lea.vmem [#allocation6], %s500
        // Predicated region
        $region61: #{tpu_custom_call.1} parent=55 // pred_check
          %p502 = pneg %p104
        $region62: #{tpu_custom_call.1} parent=55 // pred_check_branch
          %504 = sbr.rel (%p502) target = $region64
        $region63: #{tpu_custom_call.1} parent=55 // pred_region
          %505 = dma.done %s498, 256
        $region64: #{tpu_custom_call.1} parent=55 // pred_fallthru
          _
        // Predicated region
        $region65: #{tpu_custom_call.1} parent=55 // pred_check
          %p506 = pneg %p130
        $region66: #{tpu_custom_call.1} parent=55 // pred_check_branch
          %508 = sbr.rel (%p506) target = $region68
        $region67: #{tpu_custom_call.1} parent=55 // pred_region
          %509 = dma.done [#allocation7], 512
        $region68: #{tpu_custom_call.1} parent=55 // pred_fallthru
          _
        // Predicated region
        $region69: #{tpu_custom_call.1} parent=55 // pred_check
          %p510 = pneg %p182
        $region70: #{tpu_custom_call.1} parent=55 // pred_check_branch
          %512 = sbr.rel (%p510) target = $region72
        $region71: #{tpu_custom_call.1} parent=55 // pred_region
          %513 = dma.done [#allocation10], 512
        $region72: #{tpu_custom_call.1} parent=55 // pred_fallthru
          _
        // Predicated region
        $region73: #{tpu_custom_call.1} parent=55 // pred_check
          %p514 = pneg %p208
        $region74: #{tpu_custom_call.1} parent=55 // pred_check_branch
          %516 = sbr.rel (%p514) target = $region76
        $region75: #{tpu_custom_call.1} parent=55 // pred_region
          %517 = dma.done [#allocation10], 512
        $region76: #{tpu_custom_call.1} parent=55 // pred_fallthru
          _
        // Predicated region
        $region77: #{tpu_custom_call.1} parent=55 // pred_check
          %p518 = pneg %p260
        $region78: #{tpu_custom_call.1} parent=55 // pred_check_branch
          %520 = sbr.rel (%p518) target = $region80
        $region79: #{tpu_custom_call.1} parent=55 // pred_region
          %521 = dma.done [#allocation13], 512
        $region80: #{tpu_custom_call.1} parent=55 // pred_fallthru
          _
        %s522 = sand.u32 %s65, 1
        %s523 = scalar_lea.sflag [#allocation4], %s522
        %s524 = sand.u32 %s65, 1
        %s525 = smul.addr %s524, 16
        %s526 = scalar_lea.vmem [#allocation3], %s525
        %p527 = pneg %p78
        %p528 = pneg %p75
        %s529 = sand.u32 %s36, 1
        %s530 = scalar_lea.sflag [#allocation7], %s529
        %s531 = sand.u32 %s91, 1
        %s532 = smul.addr %s531, 16
        %s533 = scalar_lea.vmem [#allocation6], %s532
        %p534 = pneg %p104
        %p535 = pneg %p101
        %p536 = pneg %p130
        %p537 = pneg %p127
        %p538 = scmp.lt.s32.totalorder %s43, 0
        %s539 = scalar_select %p538, %s43, 0
        %s540 = scalar_lea.vmem %s3, %s539
        %p541 = pneg %p156
        %p542 = pneg %p153
        %p543 = pneg %p182
        %p544 = pneg %p179
        %p545 = pneg %p208
        %p546 = pneg %p205
        %p547 = scmp.lt.s32.totalorder %s43, 0
        %s548 = scalar_select %p547, %s43, 0
        %s549 = scalar_lea.vmem %s6, %s548
        %p550 = pneg %p234
        %p551 = pneg %p231
        %p552 = pneg %p260
        %p553 = pneg %p257
        %p554 = pneg %p281
        %p555 = pneg %p278
        %p556 = pneg %p309
        %p557 = pneg %p306
        %s558 = sand.u32 %s296, 1
        %s559 = scalar_lea.sflag [#allocation5], %s558
        %s560 = sand.u32 %s296, 1
        %s561 = smul.addr %s560, 16
        %s562 = scalar_lea.vmem [#allocation14], %s561
        %p563 = pneg %p339
        %p564 = pneg %p336
        %s565 = sand.u32 %s326, 1
        %s566 = scalar_lea.sflag [#allocation16], %s565
        %s567 = sand.u32 %s326, 1
        %s568 = smul.addr %s567, 64
        %s569 = scalar_lea.vmem [#allocation15], %s568
        %s570 = smul.u32 2, %s42
        %s571 = smul.u32 4, %s43
        %p572 = scmp.lt.s32.totalorder %s43, 0
        %s573 = scalar_select %p572, %s43, 0
        %s574 = scalar_lea.vmem %s3, %s573
        %s575 = smul.u32 4, %s43
        %s576 = smul.u32 4, %s43
        %p577 = scmp.lt.s32.totalorder %s43, 0
        %s578 = scalar_select %p577, %s43, 0
        %s579 = scalar_lea.vmem %s6, %s578
        %s580 = smul.u32 4, %s43
        %s581 = smul.u32 2, %s42
        %s582 = smul.u32 4, %s43
        %s583 = smul.u32 2, %s42
        %v584 = vld [vmem:[%s492] sm:$0xff]
        %v585 = vld [vmem:[%s492 + $0x8] sm:$0xff]
        %v586 = vld [vmem:[%s501] sm:$0xff]
        %v587 = vld [vmem:[%s501 + $0x8] sm:$0xff]
        %v588 = vld [vmem:[#allocation8] sm:$0xff]
        %v589 = vld [vmem:[#allocation8 + $0x8] sm:$0xff]
        %v590 = vld [vmem:[#allocation8 + $0x10] sm:$0xff]
        %v591 = vld [vmem:[#allocation8 + $0x18] sm:$0xff]
        %v592 = vld [vmem:[%s574] sm:$0x1]
        %v594 = vlaneseq
        %v595 = vshrl.u32 %v594, 7
        %v596 = vsub.s32 0, %v595
        %v597 = vrot.slane %v592, %v596
        %vm599 = vcmask 261120
        %v601 = vsel %vm599, %v584, 0
        %v604 = vsel %vm599, %v585, 0
        %v607 = vsel %vm599, %v588, 0
        %v610 = vsel %vm599, %v589, 0
        %v613 = vsel %vm599, %v590, 0
        %v616 = vsel %vm599, %v591, 0
        %618 = vmatprep.subr.mxu0 0.0
        %619 = vmatpush1.xpose.msra.mxu0 %v607
        %620 = vmatprep.subr.mxu0 0.0
        %621 = vmatpush1.xpose.msra.mxu0 %v610
        %622 = vmatprep.subr.mxu0 0.0
        %623 = vmatpush1.xpose.msra.mxu0 %v613
        %624 = vmatprep.subr.mxu0 0.0
        %625 = vmatpush1.xpose.msra.mxu0 %v616
        %626 = vmatprep.subr.mxu0 0.0
        %627 = vmatpush1.xpose.msra.mxu0 0.0
        %628 = vmatprep.subr.mxu0 0.0
        %629 = vmatpush1.xpose.msra.mxu0 0.0
        %630 = vmatprep.subr.mxu0 0.0
        %631 = vmatpush1.xpose.msra.mxu0 0.0
        %632 = vmatprep.subr.mxu0 0.0
        %633 = vmatpush1.xpose.msra.mxu0 0.0
        %634 = vmatprep.subr.mxu0 0.0
        %635 = vmatpush1.xpose.msra.mxu0 0.0
        %636 = vmatprep.subr.mxu0 0.0
        %637 = vmatpush1.xpose.msra.mxu0 0.0
        %638 = vmatprep.subr.mxu0 0.0
        %639 = vmatpush1.xpose.msra.mxu0 0.0
        %640 = vmatprep.subr.mxu0 0.0
        %641 = vmatpush1.xpose.msra.mxu0 0.0
        %642 = vmatprep.subr.mxu0 0.0
        %643 = vmatpush1.xpose.msra.mxu0 0.0
        %644 = vmatprep.subr.mxu0 0.0
        %645 = vmatpush1.xpose.msra.mxu0 0.0
        %646 = vmatprep.subr.mxu0 0.0
        %647 = vmatpush1.xpose.msra.mxu0 0.0
        %648 = vmatprep.subr.mxu0 0.0
        %649 = vmatpush1.xpose.msra.mxu0 0.0
        %650 = vmatprep.subr.mxu0 0.0
        %651 = vmatpush1.xpose.msra.mxu0 0.0
        %652 = vmatprep.subr.mxu0 0.0
        %653 = vmatpush1.xpose.msra.mxu0 0.0
        %654 = vmatprep.subr.mxu0 0.0
        %655 = vmatpush1.xpose.msra.mxu0 0.0
        %656 = vmatprep.subr.mxu0 0.0
        %657 = vmatpush1.xpose.msra.mxu0 0.0
        %658 = vmatprep.subr.mxu0 0.0
        %659 = vmatpush1.xpose.msra.mxu0 0.0
        %660 = vmatprep.subr.mxu0 0.0
        %661 = vmatpush1.xpose.msra.mxu0 0.0
        %662 = vmatprep.subr.mxu0 0.0
        %663 = vmatpush1.xpose.msra.mxu0 0.0
        %664 = vmatprep.subr.mxu0 0.0
        %665 = vmatpush1.xpose.msra.mxu0 0.0
        %666 = vmatprep.subr.mxu0 0.0
        %667 = vmatpush1.xpose.msra.mxu0 0.0
        %668 = vmatprep.subr.mxu0 0.0
        %669 = vmatpush1.xpose.msra.mxu0 0.0
        %670 = vmatprep.subr.mxu0 0.0
        %671 = vmatpush1.xpose.msra.mxu0 0.0
        %672 = vmatprep.subr.mxu0 0.0
        %673 = vmatpush1.xpose.msra.mxu0 0.0
        %674 = vmatprep.subr.mxu0 0.0
        %675 = vmatpush1.xpose.msra.mxu0 0.0
        %676 = vmatprep.subr.mxu0 0.0
        %677 = vmatpush1.xpose.msra.mxu0 0.0
        %678 = vmatprep.subr.mxu0 0.0
        %679 = vmatpush1.xpose.msra.mxu0 0.0
        %680 = vmatprep.subr.mxu0 0.0
        %681 = vmatpush1.xpose.msra.mxu0 0.0
        %682 = vmatprep.mubr.f32.mxu0 0.0
        %683 = vmatmul.mubr.f32.gmra.mrb[0].mxu0 %v601
        %v684 = vpop.f32.mrb[0].mxu0
        %v685 = vadd.f32 %v597, %v684
        %v686 = vpop.f32.mrb[0].mxu0
        %687 = vmatprep.mubr.f32.mxu0 0.0
        %688 = vmatmul.mubr.f32.gmra.mrb[0].mxu0 %v604
        %v689 = vpop.f32.mrb[0].mxu0
        %v690 = vadd.f32 %v597, %v689
        %v691 = vpop.f32.mrb[0].mxu0
        %692 = vdwg.mxu0
        %v693 = vld [vmem:[#allocation9] sm:$0xff]
        %v694 = vld [vmem:[#allocation9 + $0x8] sm:$0xff]
        %v695 = vld [vmem:[#allocation9 + $0x10] sm:$0xff]
        %v696 = vld [vmem:[#allocation9 + $0x18] sm:$0xff]
        %v698 = vsel %vm599, %v586, 0
        %v701 = vsel %vm599, %v587, 0
        %v704 = vsel %vm599, %v693, 0
        %v707 = vsel %vm599, %v694, 0
        %v710 = vsel %vm599, %v695, 0
        %v713 = vsel %vm599, %v696, 0
        %715 = vmatprep.subr.mxu0 0.0
        %716 = vmatpush1.xpose.msra.mxu0 %v704
        %717 = vmatprep.subr.mxu0 0.0
        %718 = vmatpush1.xpose.msra.mxu0 %v707
        %719 = vmatprep.subr.mxu0 0.0
        %720 = vmatpush1.xpose.msra.mxu0 %v710
        %721 = vmatprep.subr.mxu0 0.0
        %722 = vmatpush1.xpose.msra.mxu0 %v713
        %723 = vmatprep.subr.mxu0 0.0
        %724 = vmatpush1.xpose.msra.mxu0 0.0
        %725 = vmatprep.subr.mxu0 0.0
        %726 = vmatpush1.xpose.msra.mxu0 0.0
        %727 = vmatprep.subr.mxu0 0.0
        %728 = vmatpush1.xpose.msra.mxu0 0.0
        %729 = vmatprep.subr.mxu0 0.0
        %730 = vmatpush1.xpose.msra.mxu0 0.0
        %731 = vmatprep.subr.mxu0 0.0
        %732 = vmatpush1.xpose.msra.mxu0 0.0
        %733 = vmatprep.subr.mxu0 0.0
        %734 = vmatpush1.xpose.msra.mxu0 0.0
        %735 = vmatprep.subr.mxu0 0.0
        %736 = vmatpush1.xpose.msra.mxu0 0.0
        %737 = vmatprep.subr.mxu0 0.0
        %738 = vmatpush1.xpose.msra.mxu0 0.0
        %739 = vmatprep.subr.mxu0 0.0
        %740 = vmatpush1.xpose.msra.mxu0 0.0
        %741 = vmatprep.subr.mxu0 0.0
        %742 = vmatpush1.xpose.msra.mxu0 0.0
        %743 = vmatprep.subr.mxu0 0.0
        %744 = vmatpush1.xpose.msra.mxu0 0.0
        %745 = vmatprep.subr.mxu0 0.0
        %746 = vmatpush1.xpose.msra.mxu0 0.0
        %747 = vmatprep.subr.mxu0 0.0
        %748 = vmatpush1.xpose.msra.mxu0 0.0
        %749 = vmatprep.subr.mxu0 0.0
        %750 = vmatpush1.xpose.msra.mxu0 0.0
        %751 = vmatprep.subr.mxu0 0.0
        %752 = vmatpush1.xpose.msra.mxu0 0.0
        %753 = vmatprep.subr.mxu0 0.0
        %754 = vmatpush1.xpose.msra.mxu0 0.0
        %755 = vmatprep.subr.mxu0 0.0
        %756 = vmatpush1.xpose.msra.mxu0 0.0
        %757 = vmatprep.subr.mxu0 0.0
        %758 = vmatpush1.xpose.msra.mxu0 0.0
        %759 = vmatprep.subr.mxu0 0.0
        %760 = vmatpush1.xpose.msra.mxu0 0.0
        %761 = vmatprep.subr.mxu0 0.0
        %762 = vmatpush1.xpose.msra.mxu0 0.0
        %763 = vmatprep.subr.mxu0 0.0
        %764 = vmatpush1.xpose.msra.mxu0 0.0
        %765 = vmatprep.subr.mxu0 0.0
        %766 = vmatpush1.xpose.msra.mxu0 0.0
        %767 = vmatprep.subr.mxu0 0.0
        %768 = vmatpush1.xpose.msra.mxu0 0.0
        %769 = vmatprep.subr.mxu0 0.0
        %770 = vmatpush1.xpose.msra.mxu0 0.0
        %771 = vmatprep.subr.mxu0 0.0
        %772 = vmatpush1.xpose.msra.mxu0 0.0
        %773 = vmatprep.subr.mxu0 0.0
        %774 = vmatpush1.xpose.msra.mxu0 0.0
        %775 = vmatprep.subr.mxu0 0.0
        %776 = vmatpush1.xpose.msra.mxu0 0.0
        %777 = vmatprep.subr.mxu0 0.0
        %778 = vmatpush1.xpose.msra.mxu0 0.0
        %779 = vmatprep.mubr.f32.mxu0 0.0
        %780 = vmatmul.mubr.f32.gmra.mrb[0].mxu0 %v698
        %v781 = vpop.f32.mrb[0].mxu0
        %v782 = vadd.f32 0.0, %v781
        %v783 = vpop.f32.mrb[0].mxu0
        %784 = vmatprep.mubr.f32.mxu0 0.0
        %785 = vmatmul.mubr.f32.gmra.mrb[0].mxu0 %v701
        %v786 = vpop.f32.mrb[0].mxu0
        %v787 = vadd.f32 0.0, %v786
        %v788 = vpop.f32.mrb[0].mxu0
        %789 = vdwg.mxu0
        %v790 = vld [vmem:[#allocation11] sm:$0xff]
        %v791 = vld [vmem:[#allocation11 + $0x8] sm:$0xff]
        %v792 = vld [vmem:[#allocation11 + $0x10] sm:$0xff]
        %v793 = vld [vmem:[#allocation11 + $0x18] sm:$0xff]
        %v794 = vld [vmem:[%s579] sm:$0x1]
        %v796 = vlaneseq
        %v797 = vshrl.u32 %v796, 7
        %v798 = vsub.s32 0, %v797
        %v799 = vrot.slane %v794, %v798
        %v802 = vsel %vm599, %v790, 0
        %v805 = vsel %vm599, %v791, 0
        %v808 = vsel %vm599, %v792, 0
        %v811 = vsel %vm599, %v793, 0
        %813 = vmatprep.subr.mxu0 0.0
        %814 = vmatpush1.xpose.msra.mxu0 %v802
        %815 = vmatprep.subr.mxu0 0.0
        %816 = vmatpush1.xpose.msra.mxu0 %v805
        %817 = vmatprep.subr.mxu0 0.0
        %818 = vmatpush1.xpose.msra.mxu0 %v808
        %819 = vmatprep.subr.mxu0 0.0
        %820 = vmatpush1.xpose.msra.mxu0 %v811
        %821 = vmatprep.subr.mxu0 0.0
        %822 = vmatpush1.xpose.msra.mxu0 0.0
        %823 = vmatprep.subr.mxu0 0.0
        %824 = vmatpush1.xpose.msra.mxu0 0.0
        %825 = vmatprep.subr.mxu0 0.0
        %826 = vmatpush1.xpose.msra.mxu0 0.0
        %827 = vmatprep.subr.mxu0 0.0
        %828 = vmatpush1.xpose.msra.mxu0 0.0
        %829 = vmatprep.subr.mxu0 0.0
        %830 = vmatpush1.xpose.msra.mxu0 0.0
        %831 = vmatprep.subr.mxu0 0.0
        %832 = vmatpush1.xpose.msra.mxu0 0.0
        %833 = vmatprep.subr.mxu0 0.0
        %834 = vmatpush1.xpose.msra.mxu0 0.0
        %835 = vmatprep.subr.mxu0 0.0
        %836 = vmatpush1.xpose.msra.mxu0 0.0
        %837 = vmatprep.subr.mxu0 0.0
        %838 = vmatpush1.xpose.msra.mxu0 0.0
        %839 = vmatprep.subr.mxu0 0.0
        %840 = vmatpush1.xpose.msra.mxu0 0.0
        %841 = vmatprep.subr.mxu0 0.0
        %842 = vmatpush1.xpose.msra.mxu0 0.0
        %843 = vmatprep.subr.mxu0 0.0
        %844 = vmatpush1.xpose.msra.mxu0 0.0
        %845 = vmatprep.subr.mxu0 0.0
        %846 = vmatpush1.xpose.msra.mxu0 0.0
        %847 = vmatprep.subr.mxu0 0.0
        %848 = vmatpush1.xpose.msra.mxu0 0.0
        %849 = vmatprep.subr.mxu0 0.0
        %850 = vmatpush1.xpose.msra.mxu0 0.0
        %851 = vmatprep.subr.mxu0 0.0
        %852 = vmatpush1.xpose.msra.mxu0 0.0
        %853 = vmatprep.subr.mxu0 0.0
        %854 = vmatpush1.xpose.msra.mxu0 0.0
        %855 = vmatprep.subr.mxu0 0.0
        %856 = vmatpush1.xpose.msra.mxu0 0.0
        %857 = vmatprep.subr.mxu0 0.0
        %858 = vmatpush1.xpose.msra.mxu0 0.0
        %859 = vmatprep.subr.mxu0 0.0
        %860 = vmatpush1.xpose.msra.mxu0 0.0
        %861 = vmatprep.subr.mxu0 0.0
        %862 = vmatpush1.xpose.msra.mxu0 0.0
        %863 = vmatprep.subr.mxu0 0.0
        %864 = vmatpush1.xpose.msra.mxu0 0.0
        %865 = vmatprep.subr.mxu0 0.0
        %866 = vmatpush1.xpose.msra.mxu0 0.0
        %867 = vmatprep.subr.mxu0 0.0
        %868 = vmatpush1.xpose.msra.mxu0 0.0
        %869 = vmatprep.subr.mxu0 0.0
        %870 = vmatpush1.xpose.msra.mxu0 0.0
        %871 = vmatprep.subr.mxu0 0.0
        %872 = vmatpush1.xpose.msra.mxu0 0.0
        %873 = vmatprep.subr.mxu0 0.0
        %874 = vmatpush1.xpose.msra.mxu0 0.0
        %875 = vmatprep.subr.mxu0 0.0
        %876 = vmatpush1.xpose.msra.mxu0 0.0
        %877 = vmatprep.mubr.f32.mxu0 0.0
        %878 = vmatmul.mubr.f32.gmra.mrb[0].mxu0 %v698
        %v879 = vpop.f32.mrb[0].mxu0
        %v880 = vadd.f32 %v799, %v879
        %v881 = vpop.f32.mrb[0].mxu0
        %882 = vmatprep.mubr.f32.mxu0 0.0
        %883 = vmatmul.mubr.f32.gmra.mrb[0].mxu0 %v701
        %v884 = vpop.f32.mrb[0].mxu0
        %v885 = vadd.f32 %v799, %v884
        %v886 = vpop.f32.mrb[0].mxu0
        %887 = vdwg.mxu0
        %v888 = vlaneseq
        %v889 = vshrl.u32 %v888, 7
        %v890 = vadd.s32 %v889, 8
        %s891 = smul.u32 %s42, 16
        %v892 = vstv %s891
        %v893 = vadd.s32 %v889, %v892
        %v894 = vadd.s32 %v890, %v892
        %v895 = vlaneseq
        %v896 = vand.u32 %v895, 127
        %vm897 = vcmp.gt.s32.totalorder %v896, %v893
        %vm898 = vcmp.gt.s32.totalorder %v896, %v894
        %v899 = vsel %vm897, -inf, 0.0
        %v900 = vsel %vm898, -inf, 0.0
        %vm901 = vcmask 64512
        %v903 = vsel %vm901, %v685, 0
        %v906 = vsel %vm901, %v690, 0
        %v909 = vsel %vm901, %v782, 0
        %v912 = vsel %vm901, %v787, 0
        %914 = vmatprep.subr.mxu0 0.0
        %915 = vmatpush1.xpose.msra.mxu0 %v909
        %916 = vmatprep.subr.mxu0 0.0
        %917 = vmatpush1.xpose.msra.mxu0 %v912
        %918 = vmatprep.subr.mxu0 0.0
        %919 = vmatpush1.xpose.msra.mxu0 0.0
        %920 = vmatprep.subr.mxu0 0.0
        %921 = vmatpush1.xpose.msra.mxu0 0.0
        %922 = vmatprep.subr.mxu0 0.0
        %923 = vmatpush1.xpose.msra.mxu0 0.0
        %924 = vmatprep.subr.mxu0 0.0
        %925 = vmatpush1.xpose.msra.mxu0 0.0
        %926 = vmatprep.subr.mxu0 0.0
        %927 = vmatpush1.xpose.msra.mxu0 0.0
        %928 = vmatprep.subr.mxu0 0.0
        %929 = vmatpush1.xpose.msra.mxu0 0.0
        %930 = vmatprep.subr.mxu0 0.0
        %931 = vmatpush1.xpose.msra.mxu0 0.0
        %932 = vmatprep.subr.mxu0 0.0
        %933 = vmatpush1.xpose.msra.mxu0 0.0
        %934 = vmatprep.subr.mxu0 0.0
        %935 = vmatpush1.xpose.msra.mxu0 0.0
        %936 = vmatprep.subr.mxu0 0.0
        %937 = vmatpush1.xpose.msra.mxu0 0.0
        %938 = vmatprep.subr.mxu0 0.0
        %939 = vmatpush1.xpose.msra.mxu0 0.0
        %940 = vmatprep.subr.mxu0 0.0
        %941 = vmatpush1.xpose.msra.mxu0 0.0
        %942 = vmatprep.subr.mxu0 0.0
        %943 = vmatpush1.xpose.msra.mxu0 0.0
        %944 = vmatprep.subr.mxu0 0.0
        %945 = vmatpush1.xpose.msra.mxu0 0.0
        %946 = vmatprep.subr.mxu0 0.0
        %947 = vmatpush1.xpose.msra.mxu0 0.0
        %948 = vmatprep.subr.mxu0 0.0
        %949 = vmatpush1.xpose.msra.mxu0 0.0
        %950 = vmatprep.subr.mxu0 0.0
        %951 = vmatpush1.xpose.msra.mxu0 0.0
        %952 = vmatprep.subr.mxu0 0.0
        %953 = vmatpush1.xpose.msra.mxu0 0.0
        %954 = vmatprep.subr.mxu0 0.0
        %955 = vmatpush1.xpose.msra.mxu0 0.0
        %956 = vmatprep.subr.mxu0 0.0
        %957 = vmatpush1.xpose.msra.mxu0 0.0
        %958 = vmatprep.subr.mxu0 0.0
        %959 = vmatpush1.xpose.msra.mxu0 0.0
        %960 = vmatprep.subr.mxu0 0.0
        %961 = vmatpush1.xpose.msra.mxu0 0.0
        %962 = vmatprep.subr.mxu0 0.0
        %963 = vmatpush1.xpose.msra.mxu0 0.0
        %964 = vmatprep.subr.mxu0 0.0
        %965 = vmatpush1.xpose.msra.mxu0 0.0
        %966 = vmatprep.subr.mxu0 0.0
        %967 = vmatpush1.xpose.msra.mxu0 0.0
        %968 = vmatprep.subr.mxu0 0.0
        %969 = vmatpush1.xpose.msra.mxu0 0.0
        %970 = vmatprep.subr.mxu0 0.0
        %971 = vmatpush1.xpose.msra.mxu0 0.0
        %972 = vmatprep.subr.mxu0 0.0
        %973 = vmatpush1.xpose.msra.mxu0 0.0
        %974 = vmatprep.subr.mxu0 0.0
        %975 = vmatpush1.xpose.msra.mxu0 0.0
        %976 = vmatprep.subr.mxu0 0.0
        %977 = vmatpush1.xpose.msra.mxu0 0.0
        %978 = vmatprep.mubr.f32.mxu0 0.0
        %979 = vmatmul.mubr.f32.gmra.mrb[0].mxu0 %v903
        %v980 = vpop.f32.mrb[0].mxu0
        %v981 = vadd.f32 %v899, %v980
        %v982 = vpop.f32.mrb[0].mxu0
        %983 = vmatprep.mubr.f32.mxu0 0.0
        %984 = vmatmul.mubr.f32.gmra.mrb[0].mxu0 %v906
        %v985 = vpop.f32.mrb[0].mxu0
        %v986 = vadd.f32 %v900, %v985
        %v987 = vpop.f32.mrb[0].mxu0
        %988 = vdwg.mxu0
        %vm989 = vcmask 130048
        %990 = vst.msk [vmem:[%s569] sm:$0xff] %vm989, %v981
        %991 = vst.msk [vmem:[%s569 + $0x8] sm:$0xff] %vm989, %v986
        %v992 = vsel %vm989, %v981, -inf
        %993 = vmax.xlane.f32.xlu0 %v992
        %v994 = vpop.xlane.xlu0 %993
        %v995 = vsel %vm989, %v986, -inf
        %996 = vmax.xlane.f32.xlu0 %v995
        %v997 = vpop.xlane.xlu0 %996
        %v998 = vsub.f32 %v981, %v994
        %v999 = vsub.f32 %v986, %v997
        %v1000 = vmul.f32 %v998, 1.442695
        %v1001 = vpow.pop %v1000
        %v1002 = vmul.f32 %v999, 1.442695
        %v1003 = vpow.pop %v1002
        %v1004 = vsel %vm989, %v1001, 0.0
        %1005 = vadd.xlane.f32.xlu0 %v1004
        %v1006 = vpop.xlane.xlu0 %1005
        %v1007 = vsel %vm989, %v1003, 0.0
        %1008 = vadd.xlane.f32.xlu0 %v1007
        %v1009 = vpop.xlane.xlu0 %1008
        %v1010 = vrcp.pop %v1006
        %v1011 = vmul.f32 1.0, %v1010
        %v1012 = vrcp.pop %v1009
        %v1013 = vmul.f32 1.0, %v1012
        %v1014 = vmul.f32 %v1001, %v1011
        %v1015 = vmul.f32 %v1003, %v1013
        %v1017 = vsel %vm989, %v1014, 0
        %v1020 = vsel %vm989, %v1015, 0
        %1022 = vmatprep.subr.mxu0 0.0
        %1023 = vmatpush1.msra.mxu0 %v880
        %1024 = vmatprep.subr.mxu0 0.0
        %1025 = vmatpush1.msra.mxu0 %v885
        %1026 = vmatprep.subr.mxu0 0.0
        %1027 = vmatpush1.msra.mxu0 0.0
        %1028 = vmatprep.subr.mxu0 0.0
        %1029 = vmatpush1.msra.mxu0 0.0
        %1030 = vmatprep.subr.mxu0 0.0
        %1031 = vmatpush1.msra.mxu0 0.0
        %1032 = vmatprep.subr.mxu0 0.0
        %1033 = vmatpush1.msra.mxu0 0.0
        %1034 = vmatprep.subr.mxu0 0.0
        %1035 = vmatpush1.msra.mxu0 0.0
        %1036 = vmatprep.subr.mxu0 0.0
        %1037 = vmatpush1.msra.mxu0 0.0
        %1038 = vmatprep.subr.mxu0 0.0
        %1039 = vmatpush1.msra.mxu0 0.0
        %1040 = vmatprep.subr.mxu0 0.0
        %1041 = vmatpush1.msra.mxu0 0.0
        %1042 = vmatprep.subr.mxu0 0.0
        %1043 = vmatpush1.msra.mxu0 0.0
        %1044 = vmatprep.subr.mxu0 0.0
        %1045 = vmatpush1.msra.mxu0 0.0
        %1046 = vmatprep.subr.mxu0 0.0
        %1047 = vmatpush1.msra.mxu0 0.0
        %1048 = vmatprep.subr.mxu0 0.0
        %1049 = vmatpush1.msra.mxu0 0.0
        %1050 = vmatprep.subr.mxu0 0.0
        %1051 = vmatpush1.msra.mxu0 0.0
        %1052 = vmatprep.subr.mxu0 0.0
        %1053 = vmatpush1.msra.mxu0 0.0
        %1054 = vmatprep.subr.mxu0 0.0
        %1055 = vmatpush1.msra.mxu0 0.0
        %1056 = vmatprep.subr.mxu0 0.0
        %1057 = vmatpush1.msra.mxu0 0.0
        %1058 = vmatprep.subr.mxu0 0.0
        %1059 = vmatpush1.msra.mxu0 0.0
        %1060 = vmatprep.subr.mxu0 0.0
        %1061 = vmatpush1.msra.mxu0 0.0
        %1062 = vmatprep.subr.mxu0 0.0
        %1063 = vmatpush1.msra.mxu0 0.0
        %1064 = vmatprep.subr.mxu0 0.0
        %1065 = vmatpush1.msra.mxu0 0.0
        %1066 = vmatprep.subr.mxu0 0.0
        %1067 = vmatpush1.msra.mxu0 0.0
        %1068 = vmatprep.subr.mxu0 0.0
        %1069 = vmatpush1.msra.mxu0 0.0
        %1070 = vmatprep.subr.mxu0 0.0
        %1071 = vmatpush1.msra.mxu0 0.0
        %1072 = vmatprep.subr.mxu0 0.0
        %1073 = vmatpush1.msra.mxu0 0.0
        %1074 = vmatprep.subr.mxu0 0.0
        %1075 = vmatpush1.msra.mxu0 0.0
        %1076 = vmatprep.subr.mxu0 0.0
        %1077 = vmatpush1.msra.mxu0 0.0
        %1078 = vmatprep.subr.mxu0 0.0
        %1079 = vmatpush1.msra.mxu0 0.0
        %1080 = vmatprep.subr.mxu0 0.0
        %1081 = vmatpush1.msra.mxu0 0.0
        %1082 = vmatprep.subr.mxu0 0.0
        %1083 = vmatpush1.msra.mxu0 0.0
        %1084 = vmatprep.subr.mxu0 0.0
        %1085 = vmatpush1.msra.mxu0 0.0
        %1086 = vmatprep.mubr.f32.mxu0 0.0
        %1087 = vmatmul.mubr.f32.gmra.mrb[0].mxu0 %v1017
        %v1088 = vpop.f32.mrb[0].mxu0
        %v1089 = vadd.f32 0.0, %v1088
        %v1090 = vpop.f32.mrb[0].mxu0
        %1091 = vmatprep.mubr.f32.mxu0 0.0
        %1092 = vmatmul.mubr.f32.gmra.mrb[0].mxu0 %v1020
        %v1093 = vpop.f32.mrb[0].mxu0
        %v1094 = vadd.f32 0.0, %v1093
        %v1095 = vpop.f32.mrb[0].mxu0
        %1096 = vdwg.mxu0
        %1097 = vrot.lane.b32.xlu0 %v685, 120
        %v1098 = vpop.permute.xlu0 %1097
        %1099 = vrot.lane.b32.xlu0 %v690, 120
        %v1100 = vpop.permute.xlu0 %1099
        %1101 = vrot.lane.b32.xlu0 %v782, 120
        %v1102 = vpop.permute.xlu0 %1101
        %1103 = vrot.lane.b32.xlu0 %v787, 120
        %v1104 = vpop.permute.xlu0 %1103
        %v1105 = vsel %vm901, %v1098, 0
        %v1107 = vsel %vm901, %v1100, 0
        %v1109 = vsel %vm901, %v1102, 0
        %v1111 = vsel %vm901, %v1104, 0
        %1113 = vmatprep.subr.mxu0 0.0
        %1114 = vmatpush1.xpose.msra.mxu0 %v1109
        %1115 = vmatprep.subr.mxu0 0.0
        %1116 = vmatpush1.xpose.msra.mxu0 %v1111
        %1117 = vmatprep.subr.mxu0 0.0
        %1118 = vmatpush1.xpose.msra.mxu0 0.0
        %1119 = vmatprep.subr.mxu0 0.0
        %1120 = vmatpush1.xpose.msra.mxu0 0.0
        %1121 = vmatprep.subr.mxu0 0.0
        %1122 = vmatpush1.xpose.msra.mxu0 0.0
        %1123 = vmatprep.subr.mxu0 0.0
        %1124 = vmatpush1.xpose.msra.mxu0 0.0
        %1125 = vmatprep.subr.mxu0 0.0
        %1126 = vmatpush1.xpose.msra.mxu0 0.0
        %1127 = vmatprep.subr.mxu0 0.0
        %1128 = vmatpush1.xpose.msra.mxu0 0.0
        %1129 = vmatprep.subr.mxu0 0.0
        %1130 = vmatpush1.xpose.msra.mxu0 0.0
        %1131 = vmatprep.subr.mxu0 0.0
        %1132 = vmatpush1.xpose.msra.mxu0 0.0
        %1133 = vmatprep.subr.mxu0 0.0
        %1134 = vmatpush1.xpose.msra.mxu0 0.0
        %1135 = vmatprep.subr.mxu0 0.0
        %1136 = vmatpush1.xpose.msra.mxu0 0.0
        %1137 = vmatprep.subr.mxu0 0.0
        %1138 = vmatpush1.xpose.msra.mxu0 0.0
        %1139 = vmatprep.subr.mxu0 0.0
        %1140 = vmatpush1.xpose.msra.mxu0 0.0
        %1141 = vmatprep.subr.mxu0 0.0
        %1142 = vmatpush1.xpose.msra.mxu0 0.0
        %1143 = vmatprep.subr.mxu0 0.0
        %1144 = vmatpush1.xpose.msra.mxu0 0.0
        %1145 = vmatprep.subr.mxu0 0.0
        %1146 = vmatpush1.xpose.msra.mxu0 0.0
        %1147 = vmatprep.subr.mxu0 0.0
        %1148 = vmatpush1.xpose.msra.mxu0 0.0
        %1149 = vmatprep.subr.mxu0 0.0
        %1150 = vmatpush1.xpose.msra.mxu0 0.0
        %1151 = vmatprep.subr.mxu0 0.0
        %1152 = vmatpush1.xpose.msra.mxu0 0.0
        %1153 = vmatprep.subr.mxu0 0.0
        %1154 = vmatpush1.xpose.msra.mxu0 0.0
        %1155 = vmatprep.subr.mxu0 0.0
        %1156 = vmatpush1.xpose.msra.mxu0 0.0
        %1157 = vmatprep.subr.mxu0 0.0
        %1158 = vmatpush1.xpose.msra.mxu0 0.0
        %1159 = vmatprep.subr.mxu0 0.0
        %1160 = vmatpush1.xpose.msra.mxu0 0.0
        %1161 = vmatprep.subr.mxu0 0.0
        %1162 = vmatpush1.xpose.msra.mxu0 0.0
        %1163 = vmatprep.subr.mxu0 0.0
        %1164 = vmatpush1.xpose.msra.mxu0 0.0
        %1165 = vmatprep.subr.mxu0 0.0
        %1166 = vmatpush1.xpose.msra.mxu0 0.0
        %1167 = vmatprep.subr.mxu0 0.0
        %1168 = vmatpush1.xpose.msra.mxu0 0.0
        %1169 = vmatprep.subr.mxu0 0.0
        %1170 = vmatpush1.xpose.msra.mxu0 0.0
        %1171 = vmatprep.subr.mxu0 0.0
        %1172 = vmatpush1.xpose.msra.mxu0 0.0
        %1173 = vmatprep.subr.mxu0 0.0
        %1174 = vmatpush1.xpose.msra.mxu0 0.0
        %1175 = vmatprep.subr.mxu0 0.0
        %1176 = vmatpush1.xpose.msra.mxu0 0.0
        %1177 = vmatprep.mubr.f32.mxu0 0.0
        %1178 = vmatmul.mubr.f32.gmra.mrb[0].mxu0 %v1105
        %v1179 = vpop.f32.mrb[0].mxu0
        %v1180 = vadd.f32 %v899, %v1179
        %v1181 = vpop.f32.mrb[0].mxu0
        %1182 = vmatprep.mubr.f32.mxu0 0.0
        %1183 = vmatmul.mubr.f32.gmra.mrb[0].mxu0 %v1107
        %v1184 = vpop.f32.mrb[0].mxu0
        %v1185 = vadd.f32 %v900, %v1184
        %v1186 = vpop.f32.mrb[0].mxu0
        %1187 = vdwg.mxu0
        %s1188 = scalar_lea.vmem %s569, 16 [#allocation15]
        %1189 = vst.msk [vmem:[%s1188] sm:$0xff] %vm989, %v1180
        %1190 = vst.msk [vmem:[%s1188 + $0x8] sm:$0xff] %vm989, %v1185
        %v1191 = vsel %vm989, %v1180, -inf
        %1192 = vmax.xlane.f32.xlu0 %v1191
        %v1193 = vpop.xlane.xlu0 %1192
        %v1194 = vsel %vm989, %v1185, -inf
        %1195 = vmax.xlane.f32.xlu0 %v1194
        %v1196 = vpop.xlane.xlu0 %1195
        %v1197 = vsub.f32 %v1180, %v1193
        %v1198 = vsub.f32 %v1185, %v1196
        %v1199 = vmul.f32 %v1197, 1.442695
        %v1200 = vpow.pop %v1199
        %v1201 = vmul.f32 %v1198, 1.442695
        %v1202 = vpow.pop %v1201
        %v1203 = vsel %vm989, %v1200, 0.0
        %1204 = vadd.xlane.f32.xlu0 %v1203
        %v1205 = vpop.xlane.xlu0 %1204
        %v1206 = vsel %vm989, %v1202, 0.0
        %1207 = vadd.xlane.f32.xlu0 %v1206
        %v1208 = vpop.xlane.xlu0 %1207
        %v1209 = vrcp.pop %v1205
        %v1210 = vmul.f32 1.0, %v1209
        %v1211 = vrcp.pop %v1208
        %v1212 = vmul.f32 1.0, %v1211
        %v1213 = vmul.f32 %v1200, %v1210
        %v1214 = vmul.f32 %v1202, %v1212
        %1217 = vrot.lane.b32.xlu0 %v880, 120
        %v1218 = vpop.permute.xlu0 %1217
        %1219 = vrot.lane.b32.xlu0 %v885, 120
        %v1220 = vpop.permute.xlu0 %1219
        %v1224 = vsel %vm989, %v1213, 0
        %v1227 = vsel %vm989, %v1214, 0
        %1229 = vmatprep.subr.mxu0 0.0
        %1230 = vmatpush1.msra.mxu0 %v1218
        %1231 = vmatprep.subr.mxu0 0.0
        %1232 = vmatpush1.msra.mxu0 %v1220
        %1233 = vmatprep.subr.mxu0 0.0
        %1234 = vmatpush1.msra.mxu0 0.0
        %1235 = vmatprep.subr.mxu0 0.0
        %1236 = vmatpush1.msra.mxu0 0.0
        %1237 = vmatprep.subr.mxu0 0.0
        %1238 = vmatpush1.msra.mxu0 0.0
        %1239 = vmatprep.subr.mxu0 0.0
        %1240 = vmatpush1.msra.mxu0 0.0
        %1241 = vmatprep.subr.mxu0 0.0
        %1242 = vmatpush1.msra.mxu0 0.0
        %1243 = vmatprep.subr.mxu0 0.0
        %1244 = vmatpush1.msra.mxu0 0.0
        %1245 = vmatprep.subr.mxu0 0.0
        %1246 = vmatpush1.msra.mxu0 0.0
        %1247 = vmatprep.subr.mxu0 0.0
        %1248 = vmatpush1.msra.mxu0 0.0
        %1249 = vmatprep.subr.mxu0 0.0
        %1250 = vmatpush1.msra.mxu0 0.0
        %1251 = vmatprep.subr.mxu0 0.0
        %1252 = vmatpush1.msra.mxu0 0.0
        %1253 = vmatprep.subr.mxu0 0.0
        %1254 = vmatpush1.msra.mxu0 0.0
        %1255 = vmatprep.subr.mxu0 0.0
        %1256 = vmatpush1.msra.mxu0 0.0
        %1257 = vmatprep.subr.mxu0 0.0
        %1258 = vmatpush1.msra.mxu0 0.0
        %1259 = vmatprep.subr.mxu0 0.0
        %1260 = vmatpush1.msra.mxu0 0.0
        %1261 = vmatprep.subr.mxu0 0.0
        %1262 = vmatpush1.msra.mxu0 0.0
        %1263 = vmatprep.subr.mxu0 0.0
        %1264 = vmatpush1.msra.mxu0 0.0
        %1265 = vmatprep.subr.mxu0 0.0
        %1266 = vmatpush1.msra.mxu0 0.0
        %1267 = vmatprep.subr.mxu0 0.0
        %1268 = vmatpush1.msra.mxu0 0.0
        %1269 = vmatprep.subr.mxu0 0.0
        %1270 = vmatpush1.msra.mxu0 0.0
        %1271 = vmatprep.subr.mxu0 0.0
        %1272 = vmatpush1.msra.mxu0 0.0
        %1273 = vmatprep.subr.mxu0 0.0
        %1274 = vmatpush1.msra.mxu0 0.0
        %1275 = vmatprep.subr.mxu0 0.0
        %1276 = vmatpush1.msra.mxu0 0.0
        %1277 = vmatprep.subr.mxu0 0.0
        %1278 = vmatpush1.msra.mxu0 0.0
        %1279 = vmatprep.subr.mxu0 0.0
        %1280 = vmatpush1.msra.mxu0 0.0
        %1281 = vmatprep.subr.mxu0 0.0
        %1282 = vmatpush1.msra.mxu0 0.0
        %1283 = vmatprep.subr.mxu0 0.0
        %1284 = vmatpush1.msra.mxu0 0.0
        %1285 = vmatprep.subr.mxu0 0.0
        %1286 = vmatpush1.msra.mxu0 0.0
        %1287 = vmatprep.subr.mxu0 0.0
        %1288 = vmatpush1.msra.mxu0 0.0
        %1289 = vmatprep.subr.mxu0 0.0
        %1290 = vmatpush1.msra.mxu0 0.0
        %1291 = vmatprep.subr.mxu0 0.0
        %1292 = vmatpush1.msra.mxu0 0.0
        %1293 = vmatprep.mubr.f32.mxu0 0.0
        %1294 = vmatmul.mubr.f32.gmra.mrb[0].mxu0 %v1224
        %v1295 = vpop.f32.mrb[0].mxu0
        %v1296 = vadd.f32 0.0, %v1295
        %v1297 = vpop.f32.mrb[0].mxu0
        %1298 = vmatprep.mubr.f32.mxu0 0.0
        %1299 = vmatmul.mubr.f32.gmra.mrb[0].mxu0 %v1227
        %v1300 = vpop.f32.mrb[0].mxu0
        %v1301 = vadd.f32 0.0, %v1300
        %v1302 = vpop.f32.mrb[0].mxu0
        %1303 = vdwg.mxu0
        %1304 = vrot.lane.b32.xlu0 %v685, 112
        %v1305 = vpop.permute.xlu0 %1304
        %1306 = vrot.lane.b32.xlu0 %v690, 112
        %v1307 = vpop.permute.xlu0 %1306
        %1308 = vrot.lane.b32.xlu0 %v782, 112
        %v1309 = vpop.permute.xlu0 %1308
        %1310 = vrot.lane.b32.xlu0 %v787, 112
        %v1311 = vpop.permute.xlu0 %1310
        %v1312 = vsel %vm901, %v1305, 0
        %v1314 = vsel %vm901, %v1307, 0
        %v1316 = vsel %vm901, %v1309, 0
        %v1318 = vsel %vm901, %v1311, 0
        %1320 = vmatprep.subr.mxu0 0.0
        %1321 = vmatpush1.xpose.msra.mxu0 %v1316
        %1322 = vmatprep.subr.mxu0 0.0
        %1323 = vmatpush1.xpose.msra.mxu0 %v1318
        %1324 = vmatprep.subr.mxu0 0.0
        %1325 = vmatpush1.xpose.msra.mxu0 0.0
        %1326 = vmatprep.subr.mxu0 0.0
        %1327 = vmatpush1.xpose.msra.mxu0 0.0
        %1328 = vmatprep.subr.mxu0 0.0
        %1329 = vmatpush1.xpose.msra.mxu0 0.0
        %1330 = vmatprep.subr.mxu0 0.0
        %1331 = vmatpush1.xpose.msra.mxu0 0.0
        %1332 = vmatprep.subr.mxu0 0.0
        %1333 = vmatpush1.xpose.msra.mxu0 0.0
        %1334 = vmatprep.subr.mxu0 0.0
        %1335 = vmatpush1.xpose.msra.mxu0 0.0
        %1336 = vmatprep.subr.mxu0 0.0
        %1337 = vmatpush1.xpose.msra.mxu0 0.0
        %1338 = vmatprep.subr.mxu0 0.0
        %1339 = vmatpush1.xpose.msra.mxu0 0.0
        %1340 = vmatprep.subr.mxu0 0.0
        %1341 = vmatpush1.xpose.msra.mxu0 0.0
        %1342 = vmatprep.subr.mxu0 0.0
        %1343 = vmatpush1.xpose.msra.mxu0 0.0
        %1344 = vmatprep.subr.mxu0 0.0
        %1345 = vmatpush1.xpose.msra.mxu0 0.0
        %1346 = vmatprep.subr.mxu0 0.0
        %1347 = vmatpush1.xpose.msra.mxu0 0.0
        %1348 = vmatprep.subr.mxu0 0.0
        %1349 = vmatpush1.xpose.msra.mxu0 0.0
        %1350 = vmatprep.subr.mxu0 0.0
        %1351 = vmatpush1.xpose.msra.mxu0 0.0
        %1352 = vmatprep.subr.mxu0 0.0
        %1353 = vmatpush1.xpose.msra.mxu0 0.0
        %1354 = vmatprep.subr.mxu0 0.0
        %1355 = vmatpush1.xpose.msra.mxu0 0.0
        %1356 = vmatprep.subr.mxu0 0.0
        %1357 = vmatpush1.xpose.msra.mxu0 0.0
        %1358 = vmatprep.subr.mxu0 0.0
        %1359 = vmatpush1.xpose.msra.mxu0 0.0
        %1360 = vmatprep.subr.mxu0 0.0
        %1361 = vmatpush1.xpose.msra.mxu0 0.0
        %1362 = vmatprep.subr.mxu0 0.0
        %1363 = vmatpush1.xpose.msra.mxu0 0.0
        %1364 = vmatprep.subr.mxu0 0.0
        %1365 = vmatpush1.xpose.msra.mxu0 0.0
        %1366 = vmatprep.subr.mxu0 0.0
        %1367 = vmatpush1.xpose.msra.mxu0 0.0
        %1368 = vmatprep.subr.mxu0 0.0
        %1369 = vmatpush1.xpose.msra.mxu0 0.0
        %1370 = vmatprep.subr.mxu0 0.0
        %1371 = vmatpush1.xpose.msra.mxu0 0.0
        %1372 = vmatprep.subr.mxu0 0.0
        %1373 = vmatpush1.xpose.msra.mxu0 0.0
        %1374 = vmatprep.subr.mxu0 0.0
        %1375 = vmatpush1.xpose.msra.mxu0 0.0
        %1376 = vmatprep.subr.mxu0 0.0
        %1377 = vmatpush1.xpose.msra.mxu0 0.0
        %1378 = vmatprep.subr.mxu0 0.0
        %1379 = vmatpush1.xpose.msra.mxu0 0.0
        %1380 = vmatprep.subr.mxu0 0.0
        %1381 = vmatpush1.xpose.msra.mxu0 0.0
        %1382 = vmatprep.subr.mxu0 0.0
        %1383 = vmatpush1.xpose.msra.mxu0 0.0
        %1384 = vmatprep.mubr.f32.mxu0 0.0
        %1385 = vmatmul.mubr.f32.gmra.mrb[0].mxu0 %v1312
        %v1386 = vpop.f32.mrb[0].mxu0
        %v1387 = vadd.f32 %v899, %v1386
        %v1388 = vpop.f32.mrb[0].mxu0
        %1389 = vmatprep.mubr.f32.mxu0 0.0
        %1390 = vmatmul.mubr.f32.gmra.mrb[0].mxu0 %v1314
        %v1391 = vpop.f32.mrb[0].mxu0
        %v1392 = vadd.f32 %v900, %v1391
        %v1393 = vpop.f32.mrb[0].mxu0
        %1394 = vdwg.mxu0
        %s1395 = scalar_lea.vmem %s569, 32 [#allocation15]
        %1396 = vst.msk [vmem:[%s1395] sm:$0xff] %vm989, %v1387
        %1397 = vst.msk [vmem:[%s1395 + $0x8] sm:$0xff] %vm989, %v1392
        %v1398 = vsel %vm989, %v1387, -inf
        %1399 = vmax.xlane.f32.xlu0 %v1398
        %v1400 = vpop.xlane.xlu0 %1399
        %v1401 = vsel %vm989, %v1392, -inf
        %1402 = vmax.xlane.f32.xlu0 %v1401
        %v1403 = vpop.xlane.xlu0 %1402
        %v1404 = vsub.f32 %v1387, %v1400
        %v1405 = vsub.f32 %v1392, %v1403
        %v1406 = vmul.f32 %v1404, 1.442695
        %v1407 = vpow.pop %v1406
        %v1408 = vmul.f32 %v1405, 1.442695
        %v1409 = vpow.pop %v1408
        %v1410 = vsel %vm989, %v1407, 0.0
        %1411 = vadd.xlane.f32.xlu0 %v1410
        %v1412 = vpop.xlane.xlu0 %1411
        %v1413 = vsel %vm989, %v1409, 0.0
        %1414 = vadd.xlane.f32.xlu0 %v1413
        %v1415 = vpop.xlane.xlu0 %1414
        %v1416 = vrcp.pop %v1412
        %v1417 = vmul.f32 1.0, %v1416
        %v1418 = vrcp.pop %v1415
        %v1419 = vmul.f32 1.0, %v1418
        %v1420 = vmul.f32 %v1407, %v1417
        %v1421 = vmul.f32 %v1409, %v1419
        %1422 = vrot.lane.b32.xlu0 %v880, 112
        %v1423 = vpop.permute.xlu0 %1422
        %1424 = vrot.lane.b32.xlu0 %v885, 112
        %v1425 = vpop.permute.xlu0 %1424
        %v1429 = vsel %vm989, %v1420, 0
        %v1432 = vsel %vm989, %v1421, 0
        %1434 = vmatprep.subr.mxu0 0.0
        %1435 = vmatpush1.msra.mxu0 %v1423
        %1436 = vmatprep.subr.mxu0 0.0
        %1437 = vmatpush1.msra.mxu0 %v1425
        %1438 = vmatprep.subr.mxu0 0.0
        %1439 = vmatpush1.msra.mxu0 0.0
        %1440 = vmatprep.subr.mxu0 0.0
        %1441 = vmatpush1.msra.mxu0 0.0
        %1442 = vmatprep.subr.mxu0 0.0
        %1443 = vmatpush1.msra.mxu0 0.0
        %1444 = vmatprep.subr.mxu0 0.0
        %1445 = vmatpush1.msra.mxu0 0.0
        %1446 = vmatprep.subr.mxu0 0.0
        %1447 = vmatpush1.msra.mxu0 0.0
        %1448 = vmatprep.subr.mxu0 0.0
        %1449 = vmatpush1.msra.mxu0 0.0
        %1450 = vmatprep.subr.mxu0 0.0
        %1451 = vmatpush1.msra.mxu0 0.0
        %1452 = vmatprep.subr.mxu0 0.0
        %1453 = vmatpush1.msra.mxu0 0.0
        %1454 = vmatprep.subr.mxu0 0.0
        %1455 = vmatpush1.msra.mxu0 0.0
        %1456 = vmatprep.subr.mxu0 0.0
        %1457 = vmatpush1.msra.mxu0 0.0
        %1458 = vmatprep.subr.mxu0 0.0
        %1459 = vmatpush1.msra.mxu0 0.0
        %1460 = vmatprep.subr.mxu0 0.0
        %1461 = vmatpush1.msra.mxu0 0.0
        %1462 = vmatprep.subr.mxu0 0.0
        %1463 = vmatpush1.msra.mxu0 0.0
        %1464 = vmatprep.subr.mxu0 0.0
        %1465 = vmatpush1.msra.mxu0 0.0
        %1466 = vmatprep.subr.mxu0 0.0
        %1467 = vmatpush1.msra.mxu0 0.0
        %1468 = vmatprep.subr.mxu0 0.0
        %1469 = vmatpush1.msra.mxu0 0.0
        %1470 = vmatprep.subr.mxu0 0.0
        %1471 = vmatpush1.msra.mxu0 0.0
        %1472 = vmatprep.subr.mxu0 0.0
        %1473 = vmatpush1.msra.mxu0 0.0
        %1474 = vmatprep.subr.mxu0 0.0
        %1475 = vmatpush1.msra.mxu0 0.0
        %1476 = vmatprep.subr.mxu0 0.0
        %1477 = vmatpush1.msra.mxu0 0.0
        %1478 = vmatprep.subr.mxu0 0.0
        %1479 = vmatpush1.msra.mxu0 0.0
        %1480 = vmatprep.subr.mxu0 0.0
        %1481 = vmatpush1.msra.mxu0 0.0
        %1482 = vmatprep.subr.mxu0 0.0
        %1483 = vmatpush1.msra.mxu0 0.0
        %1484 = vmatprep.subr.mxu0 0.0
        %1485 = vmatpush1.msra.mxu0 0.0
        %1486 = vmatprep.subr.mxu0 0.0
        %1487 = vmatpush1.msra.mxu0 0.0
        %1488 = vmatprep.subr.mxu0 0.0
        %1489 = vmatpush1.msra.mxu0 0.0
        %1490 = vmatprep.subr.mxu0 0.0
        %1491 = vmatpush1.msra.mxu0 0.0
        %1492 = vmatprep.subr.mxu0 0.0
        %1493 = vmatpush1.msra.mxu0 0.0
        %1494 = vmatprep.subr.mxu0 0.0
        %1495 = vmatpush1.msra.mxu0 0.0
        %1496 = vmatprep.subr.mxu0 0.0
        %1497 = vmatpush1.msra.mxu0 0.0
        %1498 = vmatprep.mubr.f32.mxu0 0.0
        %1499 = vmatmul.mubr.f32.gmra.mrb[0].mxu0 %v1429
        %v1500 = vpop.f32.mrb[0].mxu0
        %v1501 = vadd.f32 0.0, %v1500
        %v1502 = vpop.f32.mrb[0].mxu0
        %1503 = vmatprep.mubr.f32.mxu0 0.0
        %1504 = vmatmul.mubr.f32.gmra.mrb[0].mxu0 %v1432
        %v1505 = vpop.f32.mrb[0].mxu0
        %v1506 = vadd.f32 0.0, %v1505
        %v1507 = vpop.f32.mrb[0].mxu0
        %1508 = vdwg.mxu0
        %1509 = vrot.lane.b32.xlu0 %v685, 104
        %v1510 = vpop.permute.xlu0 %1509
        %1511 = vrot.lane.b32.xlu0 %v690, 104
        %v1512 = vpop.permute.xlu0 %1511
        %1513 = vrot.lane.b32.xlu0 %v782, 104
        %v1514 = vpop.permute.xlu0 %1513
        %1515 = vrot.lane.b32.xlu0 %v787, 104
        %v1516 = vpop.permute.xlu0 %1515
        %v1517 = vsel %vm901, %v1510, 0
        %v1519 = vsel %vm901, %v1512, 0
        %v1521 = vsel %vm901, %v1514, 0
        %v1523 = vsel %vm901, %v1516, 0
        %1525 = vmatprep.subr.mxu0 0.0
        %1526 = vmatpush1.xpose.msra.mxu0 %v1521
        %1527 = vmatprep.subr.mxu0 0.0
        %1528 = vmatpush1.xpose.msra.mxu0 %v1523
        %1529 = vmatprep.subr.mxu0 0.0
        %1530 = vmatpush1.xpose.msra.mxu0 0.0
        %1531 = vmatprep.subr.mxu0 0.0
        %1532 = vmatpush1.xpose.msra.mxu0 0.0
        %1533 = vmatprep.subr.mxu0 0.0
        %1534 = vmatpush1.xpose.msra.mxu0 0.0
        %1535 = vmatprep.subr.mxu0 0.0
        %1536 = vmatpush1.xpose.msra.mxu0 0.0
        %1537 = vmatprep.subr.mxu0 0.0
        %1538 = vmatpush1.xpose.msra.mxu0 0.0
        %1539 = vmatprep.subr.mxu0 0.0
        %1540 = vmatpush1.xpose.msra.mxu0 0.0
        %1541 = vmatprep.subr.mxu0 0.0
        %1542 = vmatpush1.xpose.msra.mxu0 0.0
        %1543 = vmatprep.subr.mxu0 0.0
        %1544 = vmatpush1.xpose.msra.mxu0 0.0
        %1545 = vmatprep.subr.mxu0 0.0
        %1546 = vmatpush1.xpose.msra.mxu0 0.0
        %1547 = vmatprep.subr.mxu0 0.0
        %1548 = vmatpush1.xpose.msra.mxu0 0.0
        %1549 = vmatprep.subr.mxu0 0.0
        %1550 = vmatpush1.xpose.msra.mxu0 0.0
        %1551 = vmatprep.subr.mxu0 0.0
        %1552 = vmatpush1.xpose.msra.mxu0 0.0
        %1553 = vmatprep.subr.mxu0 0.0
        %1554 = vmatpush1.xpose.msra.mxu0 0.0
        %1555 = vmatprep.subr.mxu0 0.0
        %1556 = vmatpush1.xpose.msra.mxu0 0.0
        %1557 = vmatprep.subr.mxu0 0.0
        %1558 = vmatpush1.xpose.msra.mxu0 0.0
        %1559 = vmatprep.subr.mxu0 0.0
        %1560 = vmatpush1.xpose.msra.mxu0 0.0
        %1561 = vmatprep.subr.mxu0 0.0
        %1562 = vmatpush1.xpose.msra.mxu0 0.0
        %1563 = vmatprep.subr.mxu0 0.0
        %1564 = vmatpush1.xpose.msra.mxu0 0.0
        %1565 = vmatprep.subr.mxu0 0.0
        %1566 = vmatpush1.xpose.msra.mxu0 0.0
        %1567 = vmatprep.subr.mxu0 0.0
        %1568 = vmatpush1.xpose.msra.mxu0 0.0
        %1569 = vmatprep.subr.mxu0 0.0
        %1570 = vmatpush1.xpose.msra.mxu0 0.0
        %1571 = vmatprep.subr.mxu0 0.0
        %1572 = vmatpush1.xpose.msra.mxu0 0.0
        %1573 = vmatprep.subr.mxu0 0.0
        %1574 = vmatpush1.xpose.msra.mxu0 0.0
        %1575 = vmatprep.subr.mxu0 0.0
        %1576 = vmatpush1.xpose.msra.mxu0 0.0
        %1577 = vmatprep.subr.mxu0 0.0
        %1578 = vmatpush1.xpose.msra.mxu0 0.0
        %1579 = vmatprep.subr.mxu0 0.0
        %1580 = vmatpush1.xpose.msra.mxu0 0.0
        %1581 = vmatprep.subr.mxu0 0.0
        %1582 = vmatpush1.xpose.msra.mxu0 0.0
        %1583 = vmatprep.subr.mxu0 0.0
        %1584 = vmatpush1.xpose.msra.mxu0 0.0
        %1585 = vmatprep.subr.mxu0 0.0
        %1586 = vmatpush1.xpose.msra.mxu0 0.0
        %1587 = vmatprep.subr.mxu0 0.0
        %1588 = vmatpush1.xpose.msra.mxu0 0.0
        %1589 = vmatprep.mubr.f32.mxu0 0.0
        %1590 = vmatmul.mubr.f32.gmra.mrb[0].mxu0 %v1517
        %v1591 = vpop.f32.mrb[0].mxu0
        %v1592 = vadd.f32 %v899, %v1591
        %v1593 = vpop.f32.mrb[0].mxu0
        %1594 = vmatprep.mubr.f32.mxu0 0.0
        %1595 = vmatmul.mubr.f32.gmra.mrb[0].mxu0 %v1519
        %v1596 = vpop.f32.mrb[0].mxu0
        %v1597 = vadd.f32 %v900, %v1596
        %v1598 = vpop.f32.mrb[0].mxu0
        %1599 = vdwg.mxu0
        %s1600 = scalar_lea.vmem %s569, 48 [#allocation15]
        %1601 = vst.msk [vmem:[%s1600] sm:$0xff] %vm989, %v1592
        %1602 = vst.msk [vmem:[%s1600 + $0x8] sm:$0xff] %vm989, %v1597
        %v1603 = vsel %vm989, %v1592, -inf
        %1604 = vmax.xlane.f32.xlu0 %v1603
        %v1605 = vpop.xlane.xlu0 %1604
        %v1606 = vsel %vm989, %v1597, -inf
        %1607 = vmax.xlane.f32.xlu0 %v1606
        %v1608 = vpop.xlane.xlu0 %1607
        %v1609 = vsub.f32 %v1592, %v1605
        %v1610 = vsub.f32 %v1597, %v1608
        %v1611 = vmul.f32 %v1609, 1.442695
        %v1612 = vpow.pop %v1611
        %v1613 = vmul.f32 %v1610, 1.442695
        %v1614 = vpow.pop %v1613
        %v1615 = vsel %vm989, %v1612, 0.0
        %1616 = vadd.xlane.f32.xlu0 %v1615
        %v1617 = vpop.xlane.xlu0 %1616
        %v1618 = vsel %vm989, %v1614, 0.0
        %1619 = vadd.xlane.f32.xlu0 %v1618
        %v1620 = vpop.xlane.xlu0 %1619
        %v1621 = vrcp.pop %v1617
        %v1622 = vmul.f32 1.0, %v1621
        %v1623 = vrcp.pop %v1620
        %v1624 = vmul.f32 1.0, %v1623
        %v1625 = vmul.f32 %v1612, %v1622
        %v1626 = vmul.f32 %v1614, %v1624
        %1627 = vrot.lane.b32.xlu0 %v880, 104
        %v1628 = vpop.permute.xlu0 %1627
        %1629 = vrot.lane.b32.xlu0 %v885, 104
        %v1630 = vpop.permute.xlu0 %1629
        %v1634 = vsel %vm989, %v1625, 0
        %v1637 = vsel %vm989, %v1626, 0
        %1639 = vmatprep.subr.mxu0 0.0
        %1640 = vmatpush1.msra.mxu0 %v1628
        %1641 = vmatprep.subr.mxu0 0.0
        %1642 = vmatpush1.msra.mxu0 %v1630
        %1643 = vmatprep.subr.mxu0 0.0
        %1644 = vmatpush1.msra.mxu0 0.0
        %1645 = vmatprep.subr.mxu0 0.0
        %1646 = vmatpush1.msra.mxu0 0.0
        %1647 = vmatprep.subr.mxu0 0.0
        %1648 = vmatpush1.msra.mxu0 0.0
        %1649 = vmatprep.subr.mxu0 0.0
        %1650 = vmatpush1.msra.mxu0 0.0
        %1651 = vmatprep.subr.mxu0 0.0
        %1652 = vmatpush1.msra.mxu0 0.0
        %1653 = vmatprep.subr.mxu0 0.0
        %1654 = vmatpush1.msra.mxu0 0.0
        %1655 = vmatprep.subr.mxu0 0.0
        %1656 = vmatpush1.msra.mxu0 0.0
        %1657 = vmatprep.subr.mxu0 0.0
        %1658 = vmatpush1.msra.mxu0 0.0
        %1659 = vmatprep.subr.mxu0 0.0
        %1660 = vmatpush1.msra.mxu0 0.0
        %1661 = vmatprep.subr.mxu0 0.0
        %1662 = vmatpush1.msra.mxu0 0.0
        %1663 = vmatprep.subr.mxu0 0.0
        %1664 = vmatpush1.msra.mxu0 0.0
        %1665 = vmatprep.subr.mxu0 0.0
        %1666 = vmatpush1.msra.mxu0 0.0
        %1667 = vmatprep.subr.mxu0 0.0
        %1668 = vmatpush1.msra.mxu0 0.0
        %1669 = vmatprep.subr.mxu0 0.0
        %1670 = vmatpush1.msra.mxu0 0.0
        %1671 = vmatprep.subr.mxu0 0.0
        %1672 = vmatpush1.msra.mxu0 0.0
        %1673 = vmatprep.subr.mxu0 0.0
        %1674 = vmatpush1.msra.mxu0 0.0
        %1675 = vmatprep.subr.mxu0 0.0
        %1676 = vmatpush1.msra.mxu0 0.0
        %1677 = vmatprep.subr.mxu0 0.0
        %1678 = vmatpush1.msra.mxu0 0.0
        %1679 = vmatprep.subr.mxu0 0.0
        %1680 = vmatpush1.msra.mxu0 0.0
        %1681 = vmatprep.subr.mxu0 0.0
        %1682 = vmatpush1.msra.mxu0 0.0
        %1683 = vmatprep.subr.mxu0 0.0
        %1684 = vmatpush1.msra.mxu0 0.0
        %1685 = vmatprep.subr.mxu0 0.0
        %1686 = vmatpush1.msra.mxu0 0.0
        %1687 = vmatprep.subr.mxu0 0.0
        %1688 = vmatpush1.msra.mxu0 0.0
        %1689 = vmatprep.subr.mxu0 0.0
        %1690 = vmatpush1.msra.mxu0 0.0
        %1691 = vmatprep.subr.mxu0 0.0
        %1692 = vmatpush1.msra.mxu0 0.0
        %1693 = vmatprep.subr.mxu0 0.0
        %1694 = vmatpush1.msra.mxu0 0.0
        %1695 = vmatprep.subr.mxu0 0.0
        %1696 = vmatpush1.msra.mxu0 0.0
        %1697 = vmatprep.subr.mxu0 0.0
        %1698 = vmatpush1.msra.mxu0 0.0
        %1699 = vmatprep.subr.mxu0 0.0
        %1700 = vmatpush1.msra.mxu0 0.0
        %1701 = vmatprep.subr.mxu0 0.0
        %1702 = vmatpush1.msra.mxu0 0.0
        %1703 = vmatprep.mubr.f32.mxu0 0.0
        %1704 = vmatmul.mubr.f32.gmra.mrb[0].mxu0 %v1634
        %v1705 = vpop.f32.mrb[0].mxu0
        %v1706 = vadd.f32 0.0, %v1705
        %v1707 = vpop.f32.mrb[0].mxu0
        %1708 = vmatprep.mubr.f32.mxu0 0.0
        %1709 = vmatmul.mubr.f32.gmra.mrb[0].mxu0 %v1637
        %v1710 = vpop.f32.mrb[0].mxu0
        %v1711 = vadd.f32 0.0, %v1710
        %v1712 = vpop.f32.mrb[0].mxu0
        %1713 = vdwg.mxu0
        %1716 = vrot.lane.b32.xlu0 %v1296, 8
        %v1717 = vpop.permute.xlu0 %1716
        %1718 = vrot.lane.b32.xlu0 %v1301, 8
        %v1719 = vpop.permute.xlu0 %1718
        %1724 = vrot.lane.b32.xlu0 %v1501, 16
        %v1725 = vpop.permute.xlu0 %1724
        %1726 = vrot.lane.b32.xlu0 %v1506, 16
        %v1727 = vpop.permute.xlu0 %1726
        %1732 = vrot.lane.b32.xlu0 %v1706, 24
        %v1733 = vpop.permute.xlu0 %1732
        %1734 = vrot.lane.b32.xlu0 %v1711, 24
        %v1735 = vpop.permute.xlu0 %1734
        %v1738 = vsel %vm901, %v1089, %v1717
        %v1739 = vsel %vm901, %v1094, %v1719
        %v1740 = vsel %vm989, %v1738, %v1725
        %v1741 = vsel %vm989, %v1739, %v1727
        %vm1742 = vcmask 195584
        %v1743 = vsel %vm1742, %v1740, %v1733
        %v1744 = vsel %vm1742, %v1741, %v1735
        %v1745 = vld [vmem:[#allocation12] sm:$0xff]
        %v1746 = vld [vmem:[#allocation12 + $0x8] sm:$0xff]
        %v1747 = vld [vmem:[#allocation12 + $0x10] sm:$0xff]
        %v1748 = vld [vmem:[#allocation12 + $0x18] sm:$0xff]
        %v1750 = vsel %vm599, %v1743, 0
        %v1753 = vsel %vm599, %v1744, 0
        %1755 = vmatprep.subr.mxu0 0.0
        %1756 = vmatpush1.msra.mxu0 %v1745
        %1757 = vmatprep.subr.mxu0 0.0
        %1758 = vmatpush1.msra.mxu0 %v1746
        %1759 = vmatprep.subr.mxu0 0.0
        %1760 = vmatpush1.msra.mxu0 %v1747
        %1761 = vmatprep.subr.mxu0 0.0
        %1762 = vmatpush1.msra.mxu0 %v1748
        %1763 = vmatprep.subr.mxu0 0.0
        %1764 = vmatpush1.msra.mxu0 0.0
        %1765 = vmatprep.subr.mxu0 0.0
        %1766 = vmatpush1.msra.mxu0 0.0
        %1767 = vmatprep.subr.mxu0 0.0
        %1768 = vmatpush1.msra.mxu0 0.0
        %1769 = vmatprep.subr.mxu0 0.0
        %1770 = vmatpush1.msra.mxu0 0.0
        %1771 = vmatprep.subr.mxu0 0.0
        %1772 = vmatpush1.msra.mxu0 0.0
        %1773 = vmatprep.subr.mxu0 0.0
        %1774 = vmatpush1.msra.mxu0 0.0
        %1775 = vmatprep.subr.mxu0 0.0
        %1776 = vmatpush1.msra.mxu0 0.0
        %1777 = vmatprep.subr.mxu0 0.0
        %1778 = vmatpush1.msra.mxu0 0.0
        %1779 = vmatprep.subr.mxu0 0.0
        %1780 = vmatpush1.msra.mxu0 0.0
        %1781 = vmatprep.subr.mxu0 0.0
        %1782 = vmatpush1.msra.mxu0 0.0
        %1783 = vmatprep.subr.mxu0 0.0
        %1784 = vmatpush1.msra.mxu0 0.0
        %1785 = vmatprep.subr.mxu0 0.0
        %1786 = vmatpush1.msra.mxu0 0.0
        %1787 = vmatprep.subr.mxu0 0.0
        %1788 = vmatpush1.msra.mxu0 0.0
        %1789 = vmatprep.subr.mxu0 0.0
        %1790 = vmatpush1.msra.mxu0 0.0
        %1791 = vmatprep.subr.mxu0 0.0
        %1792 = vmatpush1.msra.mxu0 0.0
        %1793 = vmatprep.subr.mxu0 0.0
        %1794 = vmatpush1.msra.mxu0 0.0
        %1795 = vmatprep.subr.mxu0 0.0
        %1796 = vmatpush1.msra.mxu0 0.0
        %1797 = vmatprep.subr.mxu0 0.0
        %1798 = vmatpush1.msra.mxu0 0.0
        %1799 = vmatprep.subr.mxu0 0.0
        %1800 = vmatpush1.msra.mxu0 0.0
        %1801 = vmatprep.subr.mxu0 0.0
        %1802 = vmatpush1.msra.mxu0 0.0
        %1803 = vmatprep.subr.mxu0 0.0
        %1804 = vmatpush1.msra.mxu0 0.0
        %1805 = vmatprep.subr.mxu0 0.0
        %1806 = vmatpush1.msra.mxu0 0.0
        %1807 = vmatprep.subr.mxu0 0.0
        %1808 = vmatpush1.msra.mxu0 0.0
        %1809 = vmatprep.subr.mxu0 0.0
        %1810 = vmatpush1.msra.mxu0 0.0
        %1811 = vmatprep.subr.mxu0 0.0
        %1812 = vmatpush1.msra.mxu0 0.0
        %1813 = vmatprep.subr.mxu0 0.0
        %1814 = vmatpush1.msra.mxu0 0.0
        %1815 = vmatprep.subr.mxu0 0.0
        %1816 = vmatpush1.msra.mxu0 0.0
        %1817 = vmatprep.subr.mxu0 0.0
        %1818 = vmatpush1.msra.mxu0 0.0
        %1819 = vmatprep.mubr.f32.mxu0 0.0
        %1820 = vmatmul.mubr.f32.gmra.mrb[0].mxu0 %v1750
        %v1821 = vpop.f32.mrb[0].mxu0
        %v1822 = vadd.f32 0.0, %v1821
        %v1823 = vpop.f32.mrb[0].mxu0
        %1824 = vmatprep.mubr.f32.mxu0 0.0
        %1825 = vmatmul.mubr.f32.gmra.mrb[0].mxu0 %v1753
        %v1826 = vpop.f32.mrb[0].mxu0
        %v1827 = vadd.f32 0.0, %v1826
        %v1828 = vpop.f32.mrb[0].mxu0
        %1829 = vdwg.mxu0
        %p1830 = scmp.eq.s32.totalorder %s43, 0
        // Predicated region
        $region81: #{tpu_custom_call.1} parent=55 // pred_check
          %p1831 = pneg %p1830
        $region82: #{tpu_custom_call.1} parent=55 // pred_check_branch
          %1833 = sbr.rel (%p1831) target = $region84
        $region83: #{tpu_custom_call.1} parent=55 // pred_region
          %1834 = vst.msk [vmem:[#allocation2] sm:$0xff] %vm599, %v1822
          %1835 = vst.msk [vmem:[#allocation2 + $0x8] sm:$0xff] %vm599, %v1827
        $region84: #{tpu_custom_call.1} parent=55 // pred_fallthru
          _
        %p1836 = scmp.gt.s32.totalorder %s43, 0
        // Predicated region
        $region85: #{tpu_custom_call.1} parent=55 // pred_check
          %p1837 = pneg %p1836
        $region86: #{tpu_custom_call.1} parent=55 // pred_check_branch
          %1839 = sbr.rel (%p1837) target = $region88
        $region87: #{tpu_custom_call.1} parent=55 // pred_region
          %v1840 = vld [vmem:[#allocation2] sm:$0xff]
          %v1841 = vld [vmem:[#allocation2 + $0x8] sm:$0xff]
          %v1842 = vadd.f32 %v1840, %v1822
          %v1843 = vadd.f32 %v1841, %v1827
          %1844 = vst.msk [vmem:[#allocation2] sm:$0xff] %vm599, %v1842
          %1845 = vst.msk [vmem:[#allocation2 + $0x8] sm:$0xff] %vm599, %v1843
        $region88: #{tpu_custom_call.1} parent=55 // pred_fallthru
          _
        // Predicated region
        $region89: #{tpu_custom_call.1} parent=55 // pred_check
          %p1846 = pneg %p1830
        $region90: #{tpu_custom_call.1} parent=55 // pred_check_branch
          %1848 = sbr.rel (%p1846) target = $region92
        $region91: #{tpu_custom_call.1} parent=55 // pred_region
          %v1849 = vld [vmem:[#allocation2] sm:$0xff]
          %v1850 = vld [vmem:[#allocation2 + $0x8] sm:$0xff]
          %v1851 = vld [vmem:[%s8] sm:$0x1]
          %v1853 = vlaneseq
          %v1854 = vshrl.u32 %v1853, 7
          %v1855 = vsub.s32 0, %v1854
          %v1856 = vrot.slane %v1851, %v1855
          %v1858 = vadd.f32 %v1849, %v1856
          %v1859 = vadd.f32 %v1850, %v1856
          %1860 = vst.msk [vmem:[%s562] sm:$0xff] %vm599, %v1858
          %1861 = vst.msk [vmem:[%s562 + $0x8] sm:$0xff] %vm599, %v1859
        $region92: #{tpu_custom_call.1} parent=55 // pred_fallthru
          _
        %s1862 = sand.u32 %s296, 1
        %s1863 = scalar_lea.sflag [#allocation5], %s1862
        %s1864 = sand.u32 %s296, 1
        %s1865 = smul.addr %s1864, 16
        %s1866 = scalar_lea.vmem [#allocation14], %s1865
        %s1867 = sand.u32 %s326, 1
        %s1868 = scalar_lea.sflag [#allocation16], %s1867
        %s1869 = sand.u32 %s326, 1
        %s1870 = smul.addr %s1869, 64
        %s1871 = scalar_lea.vmem [#allocation15], %s1870
        // Predicated region
        $region93: #{tpu_custom_call.1} parent=55 // pred_check
          %p1872 = pneg %p306
        $region94: #{tpu_custom_call.1} parent=55 // pred_check_branch
          %1874 = sbr.rel (%p1872) target = $region96
        $region95: #{tpu_custom_call.1} parent=55 // pred_region
          %s1875 = smul.u32 2, %s42
          %s1877 = ssub.s32 256, 256
          %1878 = vsyncadd %s1863, %s1877
          %s1879 = smul.addr %s41, 2
          %s1880 = sadd.s32 %s1875, %s1879
          %s1881 = smul.addr %s1880, 128
          %s1882 = scalar_lea.hbm %s9, %s1881
          %s1883 = sshll.u32 %s1866, 4
          %s1884 = int_to_ptr.vmem [resolvable:$true] %s1883
          %1889 = dma.vmem_to_hbm [thread:$0]  %s1884, 256, %s1882, %s1863, 128, 128, 8
        $region96: #{tpu_custom_call.1} parent=55 // pred_fallthru
          _
        // Predicated region
        $region97: #{tpu_custom_call.1} parent=55 // pred_check
          %p1890 = pneg %p336
        $region98: #{tpu_custom_call.1} parent=55 // pred_check_branch
          %1892 = sbr.rel (%p1890) target = $region100
        $region99: #{tpu_custom_call.1} parent=55 // pred_region
          %s1893 = smul.u32 4, %s43
          %s1894 = smul.u32 2, %s42
          %s1896 = ssub.s32 1024, 1024
          %1897 = vsyncadd %s1868, %s1896
          %s1898 = smul.addr %s1893, 2
          %s1899 = sadd.s32 %s1894, %s1898
          %s1900 = smul.addr %s41, 8
          %s1901 = sadd.s32 %s1899, %s1900
          %s1902 = smul.addr %s1901, 128
          %s1903 = scalar_lea.hbm %s10, %s1902
          %s1904 = sshll.u32 %s1871, 4
          %s1905 = int_to_ptr.vmem [resolvable:$true] %s1904
          %1910 = dma.vmem_to_hbm [thread:$0]  %s1905, 1024, %s1903, %s1868, 128, 128, 8
        $region100: #{tpu_custom_call.1} parent=55 // pred_fallthru
          _
      $region56: #{tpu_custom_call.1} parent=5 // pred_fallthru
        _
      %p1911 = scmp.le.s32.totalorder 2, %s31
      // Predicated region
      $region101: #{tpu_custom_call.1} parent=5 // pred_check
        %p1912 = pneg %p1911
      $region102: #{tpu_custom_call.1} parent=5 // pred_check_branch
        %1914 = sbr.rel (%p1912) target = $region104
      $region103: #{tpu_custom_call.1} parent=5 // pred_region
        %s1915 = ssub.s32 %s31, 2
        // Predicated region
        $region105: #{tpu_custom_call.1} parent=103 // pred_check
          %p1916 = pneg %p312
        $region106: #{tpu_custom_call.1} parent=103 // pred_check_branch
          %1918 = sbr.rel (%p1916) target = $region108
        $region107: #{tpu_custom_call.1} parent=103 // pred_region
          %s1919 = sand.u32 %s297, 1
          %s1920 = scalar_lea.sflag [#allocation5], %s1919
          %s1921 = sand.u32 %s297, 1
          %s1922 = smul.addr %s1921, 16
          %s1923 = scalar_lea.vmem [#allocation14], %s1922
          %1924 = dma.done %s1920, 256
        $region108: #{tpu_custom_call.1} parent=103 // pred_fallthru
          _
        // Predicated region
        $region109: #{tpu_custom_call.1} parent=103 // pred_check
          %p1925 = pneg %p342
        $region110: #{tpu_custom_call.1} parent=103 // pred_check_branch
          %1927 = sbr.rel (%p1925) target = $region112
        $region111: #{tpu_custom_call.1} parent=103 // pred_region
          %s1928 = sand.u32 %s327, 1
          %s1929 = scalar_lea.sflag [#allocation16], %s1928
          %s1930 = sand.u32 %s327, 1
          %s1931 = smul.addr %s1930, 64
          %s1932 = scalar_lea.vmem [#allocation15], %s1931
          %1933 = dma.done %s1929, 1024
        $region112: #{tpu_custom_call.1} parent=103 // pred_fallthru
          _
      $region104: #{tpu_custom_call.1} parent=5 // pred_fallthru
        _
    $region6: #{tpu_custom_call.1} parent=1 // loop_footer
      %s35 = sadd.s32 1, %s31
    $region7: #{tpu_custom_call.1} parent=1 // loop_footer_branch
      %30 = sbr.rel target = $region3
    $region8: #{tpu_custom_call.1} parent=1 // loop_exit
      _
    %1934 = vsyncpa [#allocation4], 1
    %s1935 = scalar_lea.sflag [#allocation4], 1
    %1936 = vsyncpa %s1935, 1
    %1937 = vsyncpa [#allocation7], 1
    %s1938 = scalar_lea.sflag [#allocation7], 1
    %1939 = vsyncpa %s1938, 1
    %1940 = vsyncpa [#allocation10], 1
    %1941 = vsyncpa [#allocation13], 1
    %1942 = vsyncpa [#allocation5], 1
    %s1943 = scalar_lea.sflag [#allocation5], 1
    %1944 = vsyncpa %s1943, 1
    %1945 = vsyncpa [#allocation16], 1
    %s1946 = scalar_lea.sflag [#allocation16], 1
    %1947 = vsyncpa %s1946, 1

</llo_original>
